<compile_context>
chip_gen: v6e
topology: v6e:2x2x1
jax: 0.10.0
libtpu: 0.0.40
codegen_flags: <defaults>
</compile_context>

<pallas_src>
import functools

import jax
import jax.numpy as jnp
from jax.experimental import pallas as pl
from jax.experimental.pallas import tpu as pltpu


def _conv_stats_kernel(xp_ref, w_ref, gb_ref, conv_ref, affine_ref,
                       ssum_ref, ssq_ref, *,
                       K, TQ, Wo, Cin, Cout, M, eps, use_im2col):
    """Pass 1: conv tile -> f32 conv slab; accumulate per-channel sum/sumsq.

    xp_ref     : (Hp, Wp, Cin)   one zero-padded image (batch dim squeezed)
    w_ref      : (K*K*Cin, Cout) if use_im2col else (K*K, Cin, Cout)  [bf16]
    gb_ref     : (2, Cout) f32   row0 = gamma, row1 = beta
    conv_ref   : (TQ*Wo, Cout) f32  conv output tile
    affine_ref : (2, Cout) f32   row0 = scale, row1 = shift (written on last step)
    ssum_ref   : (8, Cout) f32   running sum   scratch (all 8 rows identical)
    ssq_ref    : (8, Cout) f32   running sumsq scratch (all 8 rows identical)
    """
    n, hb = pl.program_id(0), pl.program_id(1)
    is_first = jnp.logical_and(n == 0, hb == 0)
    is_last = jnp.logical_and(n == pl.num_programs(0) - 1,
                              hb == pl.num_programs(1) - 1)

    @pl.when(is_first)
    def _():
        ssum_ref[...] = jnp.zeros_like(ssum_ref)
        ssq_ref[...] = jnp.zeros_like(ssq_ref)

    R = TQ * Wo
    ho0 = pl.multiple_of(hb * TQ, TQ)          # first output image-row of this tile
    mm_dtype = w_ref.dtype

    if use_im2col:
        # Narrow channels (K*K*Cin < 128): one lane-concatenated block, one dot.
        cols = []
        for kh in range(K):
            for kw in range(K):
                p = xp_ref[pl.ds(ho0 + kh, TQ), pl.ds(kw, Wo), :]   # (TQ, Wo, Cin)
                cols.append(p.reshape(R, Cin))
        x2 = jnp.concatenate(cols, axis=-1).astype(mm_dtype)        # (R, K*K*Cin)
        acc = jnp.dot(x2, w_ref[...],
                      preferred_element_type=jnp.float32)           # (R, Cout) f32
    else:
        # Wide channels: accumulate K*K dots, no 9x im2col slab in VMEM.
        acc = jnp.zeros((R, Cout), jnp.float32)
        for kh in range(K):
            for kw in range(K):
                p = xp_ref[pl.ds(ho0 + kh, TQ), pl.ds(kw, Wo), :]
                p = p.reshape(R, Cin).astype(mm_dtype)
                acc = acc + jnp.dot(p, w_ref[kh * K + kw],
                                    preferred_element_type=jnp.float32)

    conv_ref[...] = acc

    # Per-channel partial sums via the MXU (ones @ acc) instead of XLU reductions.
    ones = jnp.ones((8, R), jnp.float32)
    ssum_ref[...] += jnp.dot(ones, acc, preferred_element_type=jnp.float32)
    ssq_ref[...] += jnp.dot(ones, acc * acc, preferred_element_type=jnp.float32)

    @pl.when(is_last)
    def _():
        # One-pass E[x^2]-E[x]^2 (biased var), matching nn.BatchNorm2d train mode.
        # NOTE: less numerically stable than two-pass; accumulators are kept f32.
        inv_m = 1.0 / M
        mean = ssum_ref[0:1, :] * inv_m
        var = jnp.maximum(ssq_ref[0:1, :] * inv_m - mean * mean, 0.0)
        scale = gb_ref[0:1, :] * jax.lax.rsqrt(var + eps)
        affine_ref[0:1, :] = scale
        affine_ref[1:2, :] = gb_ref[1:2, :] - mean * scale


def _bn_lrelu_kernel(conv_ref, affine_ref, out_ref, *, neg_slope):
    """Pass 2 (parallel): y = conv*scale + shift, then LeakyReLU."""
    y = conv_ref[...] * affine_ref[0:1, :] + affine_ref[1:2, :]
    out_ref[...] = jnp.where(y >= 0, y, neg_slope * y).astype(out_ref.dtype)


def convo_layer(x_nchw, weight_oihw, gamma, beta, *,
                stride=1, neg_slope=0.1, eps=1e-5,
                matmul_dtype=jnp.bfloat16, block_rows=512):
    """Pallas equivalent of ConvoLayer.forward. x: NCHW, weight: (Cout,Cin,K,K)."""
    if stride != 1:
        # TODO(synk): stride > 1 via wrapper-side space-to-depth phase split.
        raise NotImplementedError("convo_layer Pallas kernel supports stride=1 only")

    N, Cin, H, W = x_nchw.shape
    Cout, _, K, _ = weight_oihw.shape
    P = (K - 1) // 2
    Ho, Wo = H + 2 * P - K + 1, W + 2 * P - K + 1
    Hp, Wp = H + 2 * P, W + 2 * P
    if Wo % 8 != 0:
        # TODO(synk): per-output-row path for Wo not a multiple of the sublane tile
        # (the (TQ, Wo, Cin) -> (TQ*Wo, Cin) collapse requires Wo % 8 == 0).
        raise NotImplementedError("Wo must be a multiple of 8")

    # Row tile: TQ output image-rows per grid step (TQ*Wo matmul rows), TQ | Ho.
    max_tq = max(1, block_rows // Wo)
    TQ = 1
    for d in range(min(Ho, max_tq), 0, -1):
        if Ho % d == 0:
            TQ = d
            break
    HB = Ho // TQ
    R = TQ * Wo
    M = N * Ho * Wo

    # --- wrapper-side layout glue (one fused XLA transpose+pad pass, tiny) ---
    x_nhwc = jnp.transpose(x_nchw, (0, 2, 3, 1))                    # (N,H,W,Cin)
    xp = jnp.pad(x_nhwc, ((0, 0), (P, P), (P, P), (0, 0)))          # (N,Hp,Wp,Cin)

    w_khwc = jnp.transpose(weight_oihw, (2, 3, 1, 0))               # (K,K,Cin,Cout)
    use_im2col = (K * K * Cin) < 128
    if use_im2col:
        w_mat = w_khwc.reshape(K * K * Cin, Cout).astype(matmul_dtype)
        w_spec = pl.BlockSpec((K * K * Cin, Cout), lambda n, hb: (0, 0))
    else:
        w_mat = w_khwc.reshape(K * K, Cin, Cout).astype(matmul_dtype)
        w_spec = pl.BlockSpec((K * K, Cin, Cout), lambda n, hb: (0, 0, 0))

    gb = jnp.stack([gamma, beta]).astype(jnp.float32)               # (2, Cout)

    # ---------------- pass 1: conv + batch statistics ----------------
    conv_kernel = functools.partial(
        _conv_stats_kernel, K=K, TQ=TQ, Wo=Wo, Cin=Cin, Cout=Cout, M=M,
        eps=eps, use_im2col=use_im2col)

    conv_slab, affine = pl.pallas_call(
        conv_kernel,
        out_shape=(jax.ShapeDtypeStruct((M, Cout), jnp.float32),
                   jax.ShapeDtypeStruct((2, Cout), jnp.float32)),
        grid_spec=pltpu.PrefetchScalarGridSpec(
            num_scalar_prefetch=0,
            grid=(N, HB),
            in_specs=[
                # One padded image per batch index; re-DMA'd only when n changes.
                pl.BlockSpec((None, Hp, Wp, Cin), lambda n, hb: (n, 0, 0, 0)),
                w_spec,
                pl.BlockSpec((2, Cout), lambda n, hb: (0, 0)),
            ],
            out_specs=[
                pl.BlockSpec((R, Cout), lambda n, hb: (n * HB + hb, 0)),
                pl.BlockSpec((2, Cout), lambda n, hb: (0, 0)),
            ],
            scratch_shapes=[pltpu.VMEM((8, Cout), jnp.float32),
                            pltpu.VMEM((8, Cout), jnp.float32)]),
        compiler_params=pltpu.CompilerParams(
            # The stats accumulator is carried across every step -> both axes
            # must stay "arbitrary" (see TODO about per-block partial sums).
            dimension_semantics=("arbitrary", "arbitrary"),
            vmem_limit_bytes=32 * 1024 * 1024),
    )(xp, w_mat, gb)

    # ---------------- pass 2: normalize + LeakyReLU (parallel) ----------------
    out2d = pl.pallas_call(
        functools.partial(_bn_lrelu_kernel, neg_slope=neg_slope),
        out_shape=jax.ShapeDtypeStruct((M, Cout), x_nchw.dtype),
        grid_spec=pltpu.PrefetchScalarGridSpec(
            num_scalar_prefetch=0,
            grid=(N * HB,),
            in_specs=[pl.BlockSpec((R, Cout), lambda i: (i, 0)),
                      pl.BlockSpec((2, Cout), lambda i: (0, 0))],
            out_specs=pl.BlockSpec((R, Cout), lambda i: (i, 0))),
        compiler_params=pltpu.CompilerParams(
            dimension_semantics=("parallel",),
            vmem_limit_bytes=32 * 1024 * 1024),
    )(conv_slab, affine)

    out = out2d.reshape(N, Ho, Wo, Cout)
    return jnp.transpose(out, (0, 3, 1, 2))                         # NCHW


def _reference(x_nchw, weight_oihw, gamma, beta, *, stride, neg_slope, eps):
    """Pure-JAX reference mirroring the PyTorch forward (train-mode BN)."""
    K = weight_oihw.shape[-1]
    P = (K - 1) // 2
    y = jax.lax.conv_general_dilated(
        x_nchw, weight_oihw, window_strides=(stride, stride),
        padding=((P, P), (P, P)),
        dimension_numbers=("NCHW", "OIHW", "NCHW"),
        preferred_element_type=jnp.float32)
    mean = jnp.mean(y, axis=(0, 2, 3), keepdims=True)
    var = jnp.mean((y - mean) ** 2, axis=(0, 2, 3), keepdims=True)
    y = (y - mean) * jax.lax.rsqrt(var + eps)
    y = y * gamma.reshape(1, -1, 1, 1) + beta.reshape(1, -1, 1, 1)
    return jnp.where(y >= 0, y, neg_slope * y)


if __name__ == "__main__":
    # Small shapes consistent with the module: batch=2, Cin=4, Cout=8, 16x16, k=3
    N, Cin, Cout, H, W, K = 2, 4, 8, 16, 16, 3
    stride, neg_slope, eps = 1, 0.1, 1e-5

    key = jax.random.PRNGKey(0)
    kx, kw = jax.random.split(key, 2)
    x = jax.random.normal(kx, (N, Cin, H, W), dtype=jnp.float32)
    weight = jax.random.normal(kw, (Cout, Cin, K, K), dtype=jnp.float32) \
        * (1.0 / (Cin * K * K) ** 0.5)
    gamma = jnp.ones((Cout,), jnp.float32)
    beta = jnp.zeros((Cout,), jnp.float32)

    # block_rows=128 -> TQ=8, HB=2: exercises multi-block stats accumulation
    # even at these tiny demo shapes.
    out = convo_layer(x, weight, gamma, beta,
                      stride=stride, neg_slope=neg_slope, eps=eps,
                      block_rows=128)
    out = jax.block_until_ready(out)
    assert out.shape == (N, Cout, H, W), out.shape

    # (1) Kernel-logic check against a reference matched to the kernel's bf16
    #     MXU precision (inputs rounded to bf16, f32 accumulation).
    xb = x.astype(jnp.bfloat16).astype(jnp.float32)
    wb = weight.astype(jnp.bfloat16).astype(jnp.float32)
    ref_matched = _reference(xb, wb, gamma, beta,
                             stride=stride, neg_slope=neg_slope, eps=eps)
    assert jnp.allclose(out, ref_matched, atol=2e-3, rtol=2e-3), \
        float(jnp.max(jnp.abs(out - ref_matched)))

    # (2) Sanity check against the full-f32 module semantics (bound on the
    #     bf16-matmul rounding introduced per the perf review).
    ref_f32 = _reference(x, weight, gamma, beta,
                         stride=stride, neg_slope=neg_slope, eps=eps)
    assert jnp.allclose(out, ref_f32, atol=1e-1, rtol=5e-2), \
        float(jnp.max(jnp.abs(out - ref_f32)))

    print("KERNEL_OK")
</pallas_src>

<mosaic_0001>
module attributes {stable_mosaic.version = 11 : i64} {
  func.func @_conv_stats_kernel(%arg0: i32, %arg1: i32, %arg2: memref<1x18x18x4xf32, #tpu.memory_space<vmem>>, %arg3: memref<36x8xbf16, #tpu.memory_space<vmem>>, %arg4: memref<2x8xf32, #tpu.memory_space<vmem>>, %arg5: memref<128x8xf32, #tpu.memory_space<vmem>>, %arg6: memref<2x8xf32, #tpu.memory_space<vmem>>, %arg7: memref<8x8xf32, #tpu.memory_space<vmem>>, %arg8: memref<8x8xf32, #tpu.memory_space<vmem>>) attributes {dimension_semantics = [#tpu.dimension_semantics<arbitrary>, #tpu.dimension_semantics<arbitrary>], iteration_bounds = array<i64: 2, 2>, scalar_prefetch = 0 : i64, scratch_operands = 2 : i64, tpu.core_type = #tpu.core_type<tc>, window_params = [{transform_indices = @transform_0, window_bounds = array<i64: 1, 18, 18, 4>}, {pipeline_mode = #tpu.pipeline_mode<synchronous>, transform_indices = @transform_1, window_bounds = array<i64: 36, 8>}, {pipeline_mode = #tpu.pipeline_mode<synchronous>, transform_indices = @transform_2, window_bounds = array<i64: 2, 8>}, {transform_indices = @transform_3, window_bounds = array<i64: 128, 8>}, {pipeline_mode = #tpu.pipeline_mode<synchronous>, transform_indices = @transform_4, window_bounds = array<i64: 2, 8>}]} {
    %c0_i32 = arith.constant 0 : i32
    %0 = arith.cmpi eq, %arg0, %c0_i32 : i32
    %c0_i32_0 = arith.constant 0 : i32
    %1 = arith.cmpi eq, %arg1, %c0_i32_0 : i32
    %2 = arith.andi %0, %1 : i1
    %c1_i32 = arith.constant 1 : i32
    %3 = arith.cmpi eq, %arg0, %c1_i32 : i32
    %c1_i32_1 = arith.constant 1 : i32
    %4 = arith.cmpi eq, %arg1, %c1_i32_1 : i32
    %5 = arith.andi %3, %4 : i1
    %6 = arith.extui %2 : i1 to i32
    %c0_i32_2 = arith.constant 0 : i32
    %7 = arith.cmpi ne, %6, %c0_i32_2 : i32
    scf.if %7 {
      %cst_51 = arith.constant 0.000000e+00 : f32
      %72 = vector.broadcast %cst_51 : f32 to vector<8x8xf32>
      %c0_52 = arith.constant 0 : index
      %c0_53 = arith.constant 0 : index
      %73 = vector.load %arg7[%c0_52, %c0_53] : memref<8x8xf32, #tpu.memory_space<vmem>>, vector<8x8xf32>
      tpu.vector_store %arg7[%c0_52, %c0_53], %72 {strides = array<i32>} : memref<8x8xf32, #tpu.memory_space<vmem>>, vector<8x8xf32>,
      %cst_54 = arith.constant 0.000000e+00 : f32
      %74 = vector.broadcast %cst_54 : f32 to vector<8x8xf32>
      %c0_55 = arith.constant 0 : index
      %c0_56 = arith.constant 0 : index
      %75 = vector.load %arg8[%c0_55, %c0_56] : memref<8x8xf32, #tpu.memory_space<vmem>>, vector<8x8xf32>
      tpu.vector_store %arg8[%c0_55, %c0_56], %74 {strides = array<i32>} : memref<8x8xf32, #tpu.memory_space<vmem>>, vector<8x8xf32>,
    } else {
    }
    %c8_i32 = arith.constant 8 : i32
    %8 = arith.muli %arg1, %c8_i32 : i32
    %9 = tpu.assume_multiple %8, 8 : i32
    %c0_i32_3 = arith.constant 0 : i32
    %10 = arith.addi %9, %c0_i32_3 : i32
    %c0 = arith.constant 0 : index
    %11 = arith.index_cast %10 : i32 to index
    %c0_4 = arith.constant 0 : index
    %c0_5 = arith.constant 0 : index
    %12 = vector.load %arg2[%c0, %11, %c0_4, %c0_5] : memref<1x18x18x4xf32, #tpu.memory_space<vmem>>, vector<1x8x16x4xf32>
    %13 = vector.shape_cast %12 : vector<1x8x16x4xf32> to vector<8x16x4xf32>
    %14 = vector.shape_cast %13 : vector<8x16x4xf32> to vector<128x4xf32>
    %c0_i32_6 = arith.constant 0 : i32
    %15 = arith.addi %9, %c0_i32_6 : i32
    %c0_7 = arith.constant 0 : index
    %16 = arith.index_cast %15 : i32 to index
    %c1 = arith.constant 1 : index
    %c0_8 = arith.constant 0 : index
    %17 = vector.load %arg2[%c0_7, %16, %c1, %c0_8] : memref<1x18x18x4xf32, #tpu.memory_space<vmem>>, vector<1x8x16x4xf32>
    %18 = vector.shape_cast %17 : vector<1x8x16x4xf32> to vector<8x16x4xf32>
    %19 = vector.shape_cast %18 : vector<8x16x4xf32> to vector<128x4xf32>
    %c0_i32_9 = arith.constant 0 : i32
    %20 = arith.addi %9, %c0_i32_9 : i32
    %c0_10 = arith.constant 0 : index
    %21 = arith.index_cast %20 : i32 to index
    %c2 = arith.constant 2 : index
    %c0_11 = arith.constant 0 : index
    %22 = vector.load %arg2[%c0_10, %21, %c2, %c0_11] : memref<1x18x18x4xf32, #tpu.memory_space<vmem>>, vector<1x8x16x4xf32>
    %23 = vector.shape_cast %22 : vector<1x8x16x4xf32> to vector<8x16x4xf32>
    %24 = vector.shape_cast %23 : vector<8x16x4xf32> to vector<128x4xf32>
    %c1_i32_12 = arith.constant 1 : i32
    %25 = arith.addi %9, %c1_i32_12 : i32
    %c0_13 = arith.constant 0 : index
    %26 = arith.index_cast %25 : i32 to index
    %c0_14 = arith.constant 0 : index
    %c0_15 = arith.constant 0 : index
    %27 = vector.load %arg2[%c0_13, %26, %c0_14, %c0_15] : memref<1x18x18x4xf32, #tpu.memory_space<vmem>>, vector<1x8x16x4xf32>
    %28 = vector.shape_cast %27 : vector<1x8x16x4xf32> to vector<8x16x4xf32>
    %29 = vector.shape_cast %28 : vector<8x16x4xf32> to vector<128x4xf32>
    %c1_i32_16 = arith.constant 1 : i32
    %30 = arith.addi %9, %c1_i32_16 : i32
    %c0_17 = arith.constant 0 : index
    %31 = arith.index_cast %30 : i32 to index
    %c1_18 = arith.constant 1 : index
    %c0_19 = arith.constant 0 : index
    %32 = vector.load %arg2[%c0_17, %31, %c1_18, %c0_19] : memref<1x18x18x4xf32, #tpu.memory_space<vmem>>, vector<1x8x16x4xf32>
    %33 = vector.shape_cast %32 : vector<1x8x16x4xf32> to vector<8x16x4xf32>
    %34 = vector.shape_cast %33 : vector<8x16x4xf32> to vector<128x4xf32>
    %c1_i32_20 = arith.constant 1 : i32
    %35 = arith.addi %9, %c1_i32_20 : i32
    %c0_21 = arith.constant 0 : index
    %36 = arith.index_cast %35 : i32 to index
    %c2_22 = arith.constant 2 : index
    %c0_23 = arith.constant 0 : index
    %37 = vector.load %arg2[%c0_21, %36, %c2_22, %c0_23] : memref<1x18x18x4xf32, #tpu.memory_space<vmem>>, vector<1x8x16x4xf32>
    %38 = vector.shape_cast %37 : vector<1x8x16x4xf32> to vector<8x16x4xf32>
    %39 = vector.shape_cast %38 : vector<8x16x4xf32> to vector<128x4xf32>
    %c2_i32 = arith.constant 2 : i32
    %40 = arith.addi %9, %c2_i32 : i32
    %c0_24 = arith.constant 0 : index
    %41 = arith.index_cast %40 : i32 to index
    %c0_25 = arith.constant 0 : index
    %c0_26 = arith.constant 0 : index
    %42 = vector.load %arg2[%c0_24, %41, %c0_25, %c0_26] : memref<1x18x18x4xf32, #tpu.memory_space<vmem>>, vector<1x8x16x4xf32>
    %43 = vector.shape_cast %42 : vector<1x8x16x4xf32> to vector<8x16x4xf32>
    %44 = vector.shape_cast %43 : vector<8x16x4xf32> to vector<128x4xf32>
    %c2_i32_27 = arith.constant 2 : i32
    %45 = arith.addi %9, %c2_i32_27 : i32
    %c0_28 = arith.constant 0 : index
    %46 = arith.index_cast %45 : i32 to index
    %c1_29 = arith.constant 1 : index
    %c0_30 = arith.constant 0 : index
    %47 = vector.load %arg2[%c0_28, %46, %c1_29, %c0_30] : memref<1x18x18x4xf32, #tpu.memory_space<vmem>>, vector<1x8x16x4xf32>
    %48 = vector.shape_cast %47 : vector<1x8x16x4xf32> to vector<8x16x4xf32>
    %49 = vector.shape_cast %48 : vector<8x16x4xf32> to vector<128x4xf32>
    %c2_i32_31 = arith.constant 2 : i32
    %50 = arith.addi %9, %c2_i32_31 : i32
    %c0_32 = arith.constant 0 : index
    %51 = arith.index_cast %50 : i32 to index
    %c2_33 = arith.constant 2 : index
    %c0_34 = arith.constant 0 : index
    %52 = vector.load %arg2[%c0_32, %51, %c2_33, %c0_34] : memref<1x18x18x4xf32, #tpu.memory_space<vmem>>, vector<1x8x16x4xf32>
    %53 = vector.shape_cast %52 : vector<1x8x16x4xf32> to vector<8x16x4xf32>
    %54 = vector.shape_cast %53 : vector<8x16x4xf32> to vector<128x4xf32>
    %55 = tpu.concatenate %14, %19, %24, %29, %34, %39, %44, %49, %54 in 1 : vector<128x4xf32>, vector<128x4xf32>, vector<128x4xf32>, vector<128x4xf32>, vector<128x4xf32>, vector<128x4xf32>, vector<128x4xf32>, vector<128x4xf32>, vector<128x4xf32> -> vector<128x36xf32>
    %56 = arith.truncf %55 : vector<128x36xf32> to vector<128x36xbf16>
    %c0_35 = arith.constant 0 : index
    %c0_36 = arith.constant 0 : index
    %57 = vector.load %arg3[%c0_35, %c0_36] : memref<36x8xbf16, #tpu.memory_space<vmem>>, vector<36x8xbf16>
    %cst = arith.constant dense<0.000000e+00> : vector<128x8xf32>
    %58 = tpu.matmul %56, %57, %cst {dimension_numbers = #tpu.dot_dimension_numbers<[1], [0], [0], [1], [0, 0, 1, 1], [], []>} : vector<128x36xbf16>, vector<36x8xbf16>, vector<128x8xf32> -> vector<128x8xf32>
    %c0_37 = arith.constant 0 : index
    %c0_38 = arith.constant 0 : index
    %59 = vector.load %arg5[%c0_37, %c0_38] : memref<128x8xf32, #tpu.memory_space<vmem>>, vector<128x8xf32>
    tpu.vector_store %arg5[%c0_37, %c0_38], %58 {strides = array<i32>} : memref<128x8xf32, #tpu.memory_space<vmem>>, vector<128x8xf32>,
    %cst_39 = arith.constant 1.000000e+00 : f32
    %60 = vector.broadcast %cst_39 : f32 to vector<8x128xf32>
    %c0_40 = arith.constant 0 : index
    %c0_41 = arith.constant 0 : index
    %61 = vector.load %arg7[%c0_40, %c0_41] : memref<8x8xf32, #tpu.memory_space<vmem>>, vector<8x8xf32>
    %cst_42 = arith.constant dense<0.000000e+00> : vector<8x8xf32>
    %62 = tpu.matmul %60, %58, %cst_42 {dimension_numbers = #tpu.dot_dimension_numbers<[1], [0], [0], [1], [0, 0, 1, 1], [], []>} : vector<8x128xf32>, vector<128x8xf32>, vector<8x8xf32> -> vector<8x8xf32>
    %63 = arith.addf %61, %62 : vector<8x8xf32>
    %c0_43 = arith.constant 0 : index
    %c0_44 = arith.constant 0 : index
    %64 = vector.load %arg7[%c0_43, %c0_44] : memref<8x8xf32, #tpu.memory_space<vmem>>, vector<8x8xf32>
    tpu.vector_store %arg7[%c0_43, %c0_44], %63 {strides = array<i32>} : memref<8x8xf32, #tpu.memory_space<vmem>>, vector<8x8xf32>,
    %c0_45 = arith.constant 0 : index
    %c0_46 = arith.constant 0 : index
    %65 = vector.load %arg8[%c0_45, %c0_46] : memref<8x8xf32, #tpu.memory_space<vmem>>, vector<8x8xf32>
    %66 = arith.mulf %58, %58 : vector<128x8xf32>
    %cst_47 = arith.constant dense<0.000000e+00> : vector<8x8xf32>
    %67 = tpu.matmul %60, %66, %cst_47 {dimension_numbers = #tpu.dot_dimension_numbers<[1], [0], [0], [1], [0, 0, 1, 1], [], []>} : vector<8x128xf32>, vector<128x8xf32>, vector<8x8xf32> -> vector<8x8xf32>
    %68 = arith.addf %65, %67 : vector<8x8xf32>
    %c0_48 = arith.constant 0 : index
    %c0_49 = arith.constant 0 : index
    %69 = vector.load %arg8[%c0_48, %c0_49] : memref<8x8xf32, #tpu.memory_space<vmem>>, vector<8x8xf32>
    tpu.vector_store %arg8[%c0_48, %c0_49], %68 {strides = array<i32>} : memref<8x8xf32, #tpu.memory_space<vmem>>, vector<8x8xf32>,
    %70 = arith.extui %5 : i1 to i32
    %c0_i32_50 = arith.constant 0 : i32
    %71 = arith.cmpi ne, %70, %c0_i32_50 : i32
    scf.if %71 {
      %c0_51 = arith.constant 0 : index
      %c0_52 = arith.constant 0 : index
      %72 = vector.load %arg7[%c0_51, %c0_52] : memref<8x8xf32, #tpu.memory_space<vmem>>, vector<1x8xf32>
      %cst_53 = arith.constant 0.001953125 : f32
      %73 = vector.broadcast %cst_53 : f32 to vector<1x8xf32>
      %74 = arith.mulf %72, %73 : vector<1x8xf32>
      %c0_54 = arith.constant 0 : index
      %c0_55 = arith.constant 0 : index
      %75 = vector.load %arg8[%c0_54, %c0_55] : memref<8x8xf32, #tpu.memory_space<vmem>>, vector<1x8xf32>
      %cst_56 = arith.constant 0.001953125 : f32
      %76 = vector.broadcast %cst_56 : f32 to vector<1x8xf32>
      %77 = arith.mulf %75, %76 : vector<1x8xf32>
      %78 = arith.mulf %74, %74 : vector<1x8xf32>
      %79 = arith.subf %77, %78 : vector<1x8xf32>
      %cst_57 = arith.constant 0.000000e+00 : f32
      %80 = vector.broadcast %cst_57 : f32 to vector<1x8xf32>
      %81 = arith.maximumf %79, %80 : vector<1x8xf32>
      %c0_58 = arith.constant 0 : index
      %c0_59 = arith.constant 0 : index
      %82 = vector.load %arg4[%c0_58, %c0_59] : memref<2x8xf32, #tpu.memory_space<vmem>>, vector<1x8xf32>
      %cst_60 = arith.constant 9.99999974E-6 : f32
      %83 = vector.broadcast %cst_60 : f32 to vector<1x8xf32>
      %84 = arith.addf %81, %83 : vector<1x8xf32>
      %85 = math.rsqrt %84 : vector<1x8xf32>
      %86 = arith.mulf %82, %85 : vector<1x8xf32>
      %c0_61 = arith.constant 0 : index
      %c0_62 = arith.constant 0 : index
      %87 = vector.load %arg6[%c0_61, %c0_62] : memref<2x8xf32, #tpu.memory_space<vmem>>, vector<1x8xf32>
      tpu.vector_store %arg6[%c0_61, %c0_62], %86 {strides = array<i32>} : memref<2x8xf32, #tpu.memory_space<vmem>>, vector<1x8xf32>,
      %c1_63 = arith.constant 1 : index
      %c0_64 = arith.constant 0 : index
      %88 = vector.load %arg4[%c1_63, %c0_64] : memref<2x8xf32, #tpu.memory_space<vmem>>, vector<1x8xf32>
      %89 = arith.mulf %74, %86 : vector<1x8xf32>
      %90 = arith.subf %88, %89 : vector<1x8xf32>
      %c1_65 = arith.constant 1 : index
      %c0_66 = arith.constant 0 : index
      %91 = vector.load %arg6[%c1_65, %c0_66] : memref<2x8xf32, #tpu.memory_space<vmem>>, vector<1x8xf32>
      tpu.vector_store %arg6[%c1_65, %c0_66], %90 {strides = array<i32>} : memref<2x8xf32, #tpu.memory_space<vmem>>, vector<1x8xf32>,
    } else {
    }
    return
  }
  func.func @transform_0(%arg0: i32, %arg1: i32) -> (i32, i32, i32, i32) {
    %c0_i32 = arith.constant 0 : i32
    %c0_i32_0 = arith.constant 0 : i32
    %c0_i32_1 = arith.constant 0 : i32
    %c0_i32_2 = arith.constant 0 : i32
    return %arg0, %c0_i32, %c0_i32_0, %c0_i32_1 : i32, i32, i32, i32
  }
  func.func @transform_1(%arg0: i32, %arg1: i32) -> (i32, i32) {
    %c0_i32 = arith.constant 0 : i32
    %c0_i32_0 = arith.constant 0 : i32
    %c0_i32_1 = arith.constant 0 : i32
    return %c0_i32, %c0_i32_0 : i32, i32
  }
  func.func @transform_2(%arg0: i32, %arg1: i32) -> (i32, i32) {
    %c0_i32 = arith.constant 0 : i32
    %c0_i32_0 = arith.constant 0 : i32
    %c0_i32_1 = arith.constant 0 : i32
    return %c0_i32, %c0_i32_0 : i32, i32
  }
  func.func @transform_3(%arg0: i32, %arg1: i32) -> (i32, i32) {
    %c2_i32 = arith.constant 2 : i32
    %0 = arith.muli %arg0, %c2_i32 : i32
    %1 = arith.addi %0, %arg1 : i32
    %c0_i32 = arith.constant 0 : i32
    %c0_i32_0 = arith.constant 0 : i32
    return %1, %c0_i32 : i32, i32
  }
  func.func @transform_4(%arg0: i32, %arg1: i32) -> (i32, i32) {
    %c0_i32 = arith.constant 0 : i32
    %c0_i32_0 = arith.constant 0 : i32
    %c0_i32_1 = arith.constant 0 : i32
    return %c0_i32, %c0_i32_0 : i32, i32
  }
}

</mosaic_0001>

<llo_original>
// kernel: tpu_custom_call.1
$region0: #{tpu_custom_call.1}
  #allocation0 [shape = 'u32[]', space=smem, size = 0x4, offset = 0x4, fixed_abs, tag = 'smem constant byte address 0x4 - core index']
  #allocation1 [shape = 'u32[144,128]{1,0:T(1,128)}', space=vmem, size = 0x12000, scoped, tag = 'internal scratch']
  #allocation2 [shape = 'f32[8,8]{1,0:T(8,128)}', space=vmem, size = 0x1000, scoped, tag = 'scratch operand']
  #allocation3 [shape = 'f32[8,8]{1,0:T(8,128)}', space=vmem, size = 0x1000, scoped, tag = 'scratch operand']
  %s0 = inlined_call_operand.vmem [shape: f32[2,18,18,4], index: 0, kind: input, shape index: {}]
  %s1 = inlined_call_operand.vmem [shape: bf16[36,8], index: 1, kind: input, shape index: {}]
  %s2 = inlined_call_operand.vmem [shape: f32[2,8], index: 2, kind: input, shape index: {}]
  %s3 = inlined_call_operand.vmem [shape: f32[512,8], index: 3, kind: output, shape index: {0}]
  %s4 = inlined_call_operand.hbm [shape: f32[2,8], index: 4, kind: output, shape index: {1}]
  %5 = xla_tuple %s3, %s4
  %s6 = sld [smem:[#allocation0]]
  $region61: #{tpu_custom_call.1} parent=0
    _
  %s8 = ssub.s32 1, %s6
  %s9 = scalar_select 0, %s8, %s6
  $region1: #{tpu_custom_call.1} parent=0
    #allocation4 [shape = 'u8[1024]{0}', space=vmem, size = 0x400, scoped, tag = 'output window, operand 1, single buffered']
    #allocation5 [shape = 's32[2]{0}', space=sflag, size = 0x8, scoped, tag = 'scoped memory for tpu_custom_call.1']
    %10 = vsyncpa [#allocation5], 0
    loop: start=0, step=1, limit=6
    $region2: #{tpu_custom_call.1} parent=1 // loop_pre_header
      _
    $region3: #{tpu_custom_call.1} parent=1 // loop_header
      %s12 = sphi 0, %s16
      %p13 = scmp.ge.s32.totalorder %s12, 6
      %s19 = sphi 0, %s31
      %s20 = sphi 0, %s27
      %s21 = sphi 0, %s19
      %s22 = sphi 0, %s20
      %s23 = sphi 0, %s21
      %s24 = sphi 0, %s22
      %s34 = sphi 0, %s36
      %s37 = sphi 0, %s34
      %s38 = sphi 0, %s37
      %s54 = sphi 0, %s38
      %s58 = sphi 0, %s58
      %s60 = sphi 0, %s58
      %s61 = sphi 0, %s60
      %s75 = sphi 0, %s61
      %s79 = sphi 0, %s79
      %s81 = sphi 0, %s79
      %s82 = sphi 0, %s81
      %s96 = sphi 0, %s82
      %s106 = sphi 0, %s108
      %s109 = sphi 0, %s106
      %s110 = sphi 0, %s109
      %s126 = sphi 0, %s110
      %s130 = sphi 0, %s130
      %s132 = sphi 0, %s130
      %s133 = sphi 0, %s132
      %s147 = sphi 0, %s133
    $region4: #{tpu_custom_call.1} parent=1 // loop_header_branch
      %15 = sbr.rel (%p13) target = $region8
    $region5: #{tpu_custom_call.1} parent=1 // loop_body
      %s17 = ssub.s32 %s12, 1
      %s18 = ssub.s32 %s12, 2
      %s25 = sadd.s32 1, %s20
      %p26 = scmp.ge.s32.totalorder %s25, 2
      %s27 = scalar_select %p26, 0, %s25
      %s28 = sadd.s32 1, %s19
      %s29 = scalar_select %p26, %s28, %s19
      %p30 = scmp.ge.s32.totalorder %s29, 2
      %s31 = scalar_select %p30, 0, %s29
      %s32 = ssub.s32 %s19, %s31
      %p33 = scmp.eq.s32.totalorder %s32, 0
      %s35 = sadd.s32 %s34, 1
      %s36 = scalar_select %p33, %s34, %s35
      %p39 = pneg %p33
      %p40 = scmp.eq.s32.totalorder %s12, 3
      %p41 = por %p39, %p40
      %p42 = scmp.ne.s32.totalorder %s34, %s37
      %p43 = scmp.eq.s32.totalorder %s12, 0
      %p44 = por %p42, %p43
      %p45 = scmp.ne.s32.totalorder %s34, %s37
      %p46 = scmp.eq.s32.totalorder %s17, 3
      %p47 = por %p45, %p46
      %p48 = scmp.ne.s32.totalorder %s37, %s38
      %p49 = scmp.eq.s32.totalorder %s17, 0
      %p50 = por %p48, %p49
      %p51 = scmp.ne.s32.totalorder %s37, %s38
      %p52 = scmp.eq.s32.totalorder %s18, 3
      %p53 = por %p51, %p52
      %p55 = scmp.ne.s32.totalorder %s38, %s54
      %p56 = scmp.eq.s32.totalorder %s18, 0
      %p57 = por %p55, %p56
      %s59 = sadd.s32 %s58, 1
      %p62 = scmp.eq.s32.totalorder %s12, 3
      %p63 = scmp.ne.s32.totalorder %s58, %s60
      %p64 = scmp.eq.s32.totalorder %s12, 0
      %p65 = por %p63, %p64
      %p66 = scmp.ne.s32.totalorder %s58, %s60
      %p67 = scmp.eq.s32.totalorder %s17, 3
      %p68 = por %p66, %p67
      %p69 = scmp.ne.s32.totalorder %s60, %s61
      %p70 = scmp.eq.s32.totalorder %s17, 0
      %p71 = por %p69, %p70
      %p72 = scmp.ne.s32.totalorder %s60, %s61
      %p73 = scmp.eq.s32.totalorder %s18, 3
      %p74 = por %p72, %p73
      %p76 = scmp.ne.s32.totalorder %s61, %s75
      %p77 = scmp.eq.s32.totalorder %s18, 0
      %p78 = por %p76, %p77
      %s80 = sadd.s32 %s79, 1
      %p83 = scmp.eq.s32.totalorder %s12, 3
      %p84 = scmp.ne.s32.totalorder %s79, %s81
      %p85 = scmp.eq.s32.totalorder %s12, 0
      %p86 = por %p84, %p85
      %p87 = scmp.ne.s32.totalorder %s79, %s81
      %p88 = scmp.eq.s32.totalorder %s17, 3
      %p89 = por %p87, %p88
      %p90 = scmp.ne.s32.totalorder %s81, %s82
      %p91 = scmp.eq.s32.totalorder %s17, 0
      %p92 = por %p90, %p91
      %p93 = scmp.ne.s32.totalorder %s81, %s82
      %p94 = scmp.eq.s32.totalorder %s18, 3
      %p95 = por %p93, %p94
      %p97 = scmp.ne.s32.totalorder %s82, %s96
      %p98 = scmp.eq.s32.totalorder %s18, 0
      %p99 = por %p97, %p98
      %s100 = smul.u32 %s19, 2
      %s101 = sadd.s32 %s100, %s20
      %s102 = smul.u32 %s31, 2
      %s103 = sadd.s32 %s102, %s27
      %s104 = ssub.s32 %s101, %s103
      %p105 = scmp.eq.s32.totalorder %s104, 0
      %s107 = sadd.s32 %s106, 1
      %s108 = scalar_select %p105, %s106, %s107
      %p111 = pneg %p105
      %p112 = scmp.eq.s32.totalorder %s12, 3
      %p113 = por %p111, %p112
      %p114 = scmp.ne.s32.totalorder %s106, %s109
      %p115 = scmp.eq.s32.totalorder %s12, 0
      %p116 = por %p114, %p115
      %p117 = scmp.ne.s32.totalorder %s106, %s109
      %p118 = scmp.eq.s32.totalorder %s17, 3
      %p119 = por %p117, %p118
      %p120 = scmp.ne.s32.totalorder %s109, %s110
      %p121 = scmp.eq.s32.totalorder %s17, 0
      %p122 = por %p120, %p121
      %p123 = scmp.ne.s32.totalorder %s109, %s110
      %p124 = scmp.eq.s32.totalorder %s18, 3
      %p125 = por %p123, %p124
      %p127 = scmp.ne.s32.totalorder %s110, %s126
      %p128 = scmp.eq.s32.totalorder %s18, 0
      %p129 = por %p127, %p128
      %s131 = sadd.s32 %s130, 1
      %p134 = scmp.eq.s32.totalorder %s12, 3
      %p135 = scmp.ne.s32.totalorder %s130, %s132
      %p136 = scmp.eq.s32.totalorder %s12, 0
      %p137 = por %p135, %p136
      %p138 = scmp.ne.s32.totalorder %s130, %s132
      %p139 = scmp.eq.s32.totalorder %s17, 3
      %p140 = por %p138, %p139
      %p141 = scmp.ne.s32.totalorder %s132, %s133
      %p142 = scmp.eq.s32.totalorder %s17, 0
      %p143 = por %p141, %p142
      %p144 = scmp.ne.s32.totalorder %s132, %s133
      %p145 = scmp.eq.s32.totalorder %s18, 3
      %p146 = por %p144, %p145
      %p148 = scmp.ne.s32.totalorder %s133, %s147
      %p149 = scmp.eq.s32.totalorder %s18, 0
      %p150 = por %p148, %p149
      %p151 = scmp.le.s32.totalorder 1, %s12
      %p152 = scmp.lt.s32.totalorder %s12, 5
      %p153 = pnand %p151, %p152
      %p154 = pneg %p153
      // Predicated region
      $region9: #{tpu_custom_call.1} parent=5 // pred_check
        _
      $region10: #{tpu_custom_call.1} parent=5 // pred_check_branch
        %156 = sbr.rel (%p153) target = $region12
      $region11: #{tpu_custom_call.1} parent=5 // pred_region
        %s157 = ssub.s32 %s12, 1
        // Predicated region
        $region13: #{tpu_custom_call.1} parent=11 // pred_check
          %p158 = pneg %p71
        $region14: #{tpu_custom_call.1} parent=11 // pred_check_branch
          %160 = sbr.rel (%p158) target = $region16
        $region15: #{tpu_custom_call.1} parent=11 // pred_region
          _
        $region16: #{tpu_custom_call.1} parent=11 // pred_fallthru
          _
        // Predicated region
        $region17: #{tpu_custom_call.1} parent=11 // pred_check
          %p161 = pneg %p92
        $region18: #{tpu_custom_call.1} parent=11 // pred_check_branch
          %163 = sbr.rel (%p161) target = $region20
        $region19: #{tpu_custom_call.1} parent=11 // pred_region
          _
        $region20: #{tpu_custom_call.1} parent=11 // pred_fallthru
          _
      $region12: #{tpu_custom_call.1} parent=5 // pred_fallthru
        _
      %p164 = scmp.lt.s32.totalorder %s12, 4
      // Predicated region
      $region21: #{tpu_custom_call.1} parent=5 // pred_check
        %p165 = pneg %p164
      $region22: #{tpu_custom_call.1} parent=5 // pred_check_branch
        %167 = sbr.rel (%p165) target = $region24
      $region23: #{tpu_custom_call.1} parent=5 // pred_region
        // Predicated region
        $region25: #{tpu_custom_call.1} parent=23 // pred_check
          %p168 = pneg %p44
        $region26: #{tpu_custom_call.1} parent=23 // pred_check_branch
          %170 = sbr.rel (%p168) target = $region28
        $region27: #{tpu_custom_call.1} parent=23 // pred_region
          %p171 = scmp.lt.s32.totalorder %s19, 1
          %s172 = scalar_select %p171, %s19, 1
          %s173 = smul.addr %s172, 54
          %s174 = smul.addr %s173, 8
          %s175 = scalar_lea.vmem %s0, %s174
        $region28: #{tpu_custom_call.1} parent=23 // pred_fallthru
          _
      $region24: #{tpu_custom_call.1} parent=5 // pred_fallthru
        _
      %p176 = scmp.le.s32.totalorder 1, %s12
      %p177 = scmp.lt.s32.totalorder %s12, 5
      %p178 = pnand %p176, %p177
      %p179 = pneg %p178
      // Predicated region
      $region29: #{tpu_custom_call.1} parent=5 // pred_check
        _
      $region30: #{tpu_custom_call.1} parent=5 // pred_check_branch
        %181 = sbr.rel (%p178) target = $region32
      $region31: #{tpu_custom_call.1} parent=5 // pred_region
        %s182 = ssub.s32 %s12, 1
        %p183 = scmp.lt.s32.totalorder %s21, 1
        %s184 = scalar_select %p183, %s21, 1
        %s185 = smul.addr %s184, 54
        %s186 = smul.addr %s185, 8
        %s187 = scalar_lea.vmem %s0, %s186
        %p188 = pneg %p50
        %p189 = pneg %p47
        %p190 = pneg %p71
        %p191 = pneg %p68
        %p192 = pneg %p92
        %p193 = pneg %p89
        %p194 = pneg %p122
        %p195 = pneg %p119
        %s196 = smul.u32 %s21, 2
        %s197 = sadd.s32 %s196, %s22
        %s198 = smul.u32 16, %s197
        %p199 = scmp.lt.s32.totalorder %s198, 63
        %s200 = scalar_select %p199, %s198, 63
        %s201 = smul.addr %s200, 8
        %s202 = scalar_lea.vmem %s3, %s201
        %p203 = pneg %p143
        %p204 = pneg %p140
        %p205 = scmp.lt.s32.totalorder %s21, 1
        %s206 = scalar_select %p205, %s21, 1
        %s207 = smul.addr %s206, 54
        %s208 = smul.addr %s207, 8
        %s209 = scalar_lea.vmem %s0, %s208
        %s210 = smul.u32 %s21, 2
        %s211 = sadd.s32 %s210, %s22
        %s212 = smul.u32 16, %s211
        %p213 = scmp.lt.s32.totalorder %s212, 63
        %s214 = scalar_select %p213, %s212, 63
        %s215 = smul.addr %s214, 8
        %s216 = scalar_lea.vmem %s3, %s215
        %s217 = smul.u32 %s21, 2
        %s218 = sadd.s32 %s217, %s22
        %s219 = smul.u32 16, %s218
        %p221 = scmp.eq.s32.totalorder %s21, 0
        %p222 = scmp.eq.s32.totalorder %s22, 0
        %p223 = pnand %p221, %p222
        %p224 = pneg %p223
        %p225 = scmp.eq.s32.totalorder %s21, 1
        %p226 = scmp.eq.s32.totalorder %s22, 1
        %p227 = pnand %p225, %p226
        %p228 = pneg %p227
        // Predicated region
        $region33: #{tpu_custom_call.1} parent=31 // pred_check
          _
        $region34: #{tpu_custom_call.1} parent=31 // pred_check_branch
          %230 = sbr.rel (%p223) target = $region36
        $region35: #{tpu_custom_call.1} parent=31 // pred_region
          %vm231 = vcmask 64512
          %232 = vst.msk [vmem:[#allocation2] sm:$0xff] %vm231, 0.0
          %233 = vst.msk [vmem:[#allocation3] sm:$0xff] %vm231, 0.0
        $region36: #{tpu_custom_call.1} parent=31 // pred_fallthru
          _
        %s234 = smul.u32 %s22, 8
        %s235 = smul.u32 %s234, 24
        %s236 = scalar_lea.vmem %s209, %s235
        %v237 = vld [vmem:[%s236] sm:$0xff]
        %v238 = vld [vmem:[%s236 + $0x8] sm:$0xff]
        %v239 = vld [vmem:[%s236 + $0x18] sm:$0xff]
        %v240 = vld [vmem:[%s236 + $0x20] sm:$0xff]
        %v241 = vld [vmem:[%s236 + $0x30] sm:$0xff]
        %v242 = vld [vmem:[%s236 + $0x38] sm:$0xff]
        %v243 = vld [vmem:[%s236 + $0x48] sm:$0xff]
        %v244 = vld [vmem:[%s236 + $0x50] sm:$0xff]
        %v245 = vld [vmem:[%s236 + $0x60] sm:$0xff]
        %v246 = vld [vmem:[%s236 + $0x68] sm:$0xff]
        %v247 = vld [vmem:[%s236 + $0x78] sm:$0xff]
        %v248 = vld [vmem:[%s236 + $0x80] sm:$0xff]
        %v249 = vld [vmem:[%s236 + $0x90] sm:$0xff]
        %v250 = vld [vmem:[%s236 + $0x98] sm:$0xff]
        %v251 = vld [vmem:[%s236 + $0xa8] sm:$0xff]
        %v252 = vld [vmem:[%s236 + $0xb0] sm:$0xff]
        %v253 = vld [vmem:[%s236 + $0x1] sm:$0xff]
        %v254 = vld [vmem:[%s236 + $0x9] sm:$0xff]
        %v255 = vld [vmem:[%s236 + $0x19] sm:$0xff]
        %v256 = vld [vmem:[%s236 + $0x21] sm:$0xff]
        %v257 = vld [vmem:[%s236 + $0x31] sm:$0xff]
        %v258 = vld [vmem:[%s236 + $0x39] sm:$0xff]
        %v259 = vld [vmem:[%s236 + $0x49] sm:$0xff]
        %v260 = vld [vmem:[%s236 + $0x51] sm:$0xff]
        %v261 = vld [vmem:[%s236 + $0x61] sm:$0xff]
        %v262 = vld [vmem:[%s236 + $0x69] sm:$0xff]
        %v263 = vld [vmem:[%s236 + $0x79] sm:$0xff]
        %v264 = vld [vmem:[%s236 + $0x81] sm:$0xff]
        %v265 = vld [vmem:[%s236 + $0x91] sm:$0xff]
        %v266 = vld [vmem:[%s236 + $0x99] sm:$0xff]
        %v267 = vld [vmem:[%s236 + $0xa9] sm:$0xff]
        %v268 = vld [vmem:[%s236 + $0xb1] sm:$0xff]
        %v269 = vld [vmem:[%s236 + $0x2] sm:$0xff]
        %v270 = vld [vmem:[%s236 + $0xa] sm:$0xff]
        %v271 = vld [vmem:[%s236 + $0x1a] sm:$0xff]
        %v272 = vld [vmem:[%s236 + $0x22] sm:$0xff]
        %v273 = vld [vmem:[%s236 + $0x32] sm:$0xff]
        %v274 = vld [vmem:[%s236 + $0x3a] sm:$0xff]
        %v275 = vld [vmem:[%s236 + $0x4a] sm:$0xff]
        %v276 = vld [vmem:[%s236 + $0x52] sm:$0xff]
        %v277 = vld [vmem:[%s236 + $0x62] sm:$0xff]
        %v278 = vld [vmem:[%s236 + $0x6a] sm:$0xff]
        %v279 = vld [vmem:[%s236 + $0x7a] sm:$0xff]
        %v280 = vld [vmem:[%s236 + $0x82] sm:$0xff]
        %v281 = vld [vmem:[%s236 + $0x92] sm:$0xff]
        %v282 = vld [vmem:[%s236 + $0x9a] sm:$0xff]
        %v283 = vld [vmem:[%s236 + $0xaa] sm:$0xff]
        %v284 = vld [vmem:[%s236 + $0xb2] sm:$0xff]
        %s285 = sadd.s32 %s234, 1
        %s286 = smul.u32 %s285, 24
        %s287 = scalar_lea.vmem %s209, %s286
        %v288 = vld [vmem:[%s287] sm:$0xff]
        %v289 = vld [vmem:[%s287 + $0x8] sm:$0xff]
        %v290 = vld [vmem:[%s287 + $0x18] sm:$0xff]
        %v291 = vld [vmem:[%s287 + $0x20] sm:$0xff]
        %v292 = vld [vmem:[%s287 + $0x30] sm:$0xff]
        %v293 = vld [vmem:[%s287 + $0x38] sm:$0xff]
        %v294 = vld [vmem:[%s287 + $0x48] sm:$0xff]
        %v295 = vld [vmem:[%s287 + $0x50] sm:$0xff]
        %v296 = vld [vmem:[%s287 + $0x60] sm:$0xff]
        %v297 = vld [vmem:[%s287 + $0x68] sm:$0xff]
        %v298 = vld [vmem:[%s287 + $0x78] sm:$0xff]
        %v299 = vld [vmem:[%s287 + $0x80] sm:$0xff]
        %v300 = vld [vmem:[%s287 + $0x90] sm:$0xff]
        %v301 = vld [vmem:[%s287 + $0x98] sm:$0xff]
        %v302 = vld [vmem:[%s287 + $0xa8] sm:$0xff]
        %v303 = vld [vmem:[%s287 + $0xb0] sm:$0xff]
        %v304 = vld [vmem:[%s287 + $0x1] sm:$0xff]
        %v305 = vld [vmem:[%s287 + $0x9] sm:$0xff]
        %v306 = vld [vmem:[%s287 + $0x19] sm:$0xff]
        %v307 = vld [vmem:[%s287 + $0x21] sm:$0xff]
        %v308 = vld [vmem:[%s287 + $0x31] sm:$0xff]
        %v309 = vld [vmem:[%s287 + $0x39] sm:$0xff]
        %v310 = vld [vmem:[%s287 + $0x49] sm:$0xff]
        %v311 = vld [vmem:[%s287 + $0x51] sm:$0xff]
        %v312 = vld [vmem:[%s287 + $0x61] sm:$0xff]
        %v313 = vld [vmem:[%s287 + $0x69] sm:$0xff]
        %v314 = vld [vmem:[%s287 + $0x79] sm:$0xff]
        %v315 = vld [vmem:[%s287 + $0x81] sm:$0xff]
        %v316 = vld [vmem:[%s287 + $0x91] sm:$0xff]
        %v317 = vld [vmem:[%s287 + $0x99] sm:$0xff]
        %v318 = vld [vmem:[%s287 + $0xa9] sm:$0xff]
        %v319 = vld [vmem:[%s287 + $0xb1] sm:$0xff]
        %v320 = vld [vmem:[%s287 + $0x2] sm:$0xff]
        %v321 = vld [vmem:[%s287 + $0xa] sm:$0xff]
        %v322 = vld [vmem:[%s287 + $0x1a] sm:$0xff]
        %v323 = vld [vmem:[%s287 + $0x22] sm:$0xff]
        %v324 = vld [vmem:[%s287 + $0x32] sm:$0xff]
        %v325 = vld [vmem:[%s287 + $0x3a] sm:$0xff]
        %v326 = vld [vmem:[%s287 + $0x4a] sm:$0xff]
        %v327 = vld [vmem:[%s287 + $0x52] sm:$0xff]
        %v328 = vld [vmem:[%s287 + $0x62] sm:$0xff]
        %v329 = vld [vmem:[%s287 + $0x6a] sm:$0xff]
        %v330 = vld [vmem:[%s287 + $0x7a] sm:$0xff]
        %v331 = vld [vmem:[%s287 + $0x82] sm:$0xff]
        %v332 = vld [vmem:[%s287 + $0x92] sm:$0xff]
        %v333 = vld [vmem:[%s287 + $0x9a] sm:$0xff]
        %v334 = vld [vmem:[%s287 + $0xaa] sm:$0xff]
        %v335 = vld [vmem:[%s287 + $0xb2] sm:$0xff]
        %s336 = sadd.s32 %s234, 2
        %s337 = smul.u32 %s336, 24
        %s338 = scalar_lea.vmem %s209, %s337
        %v339 = vld [vmem:[%s338] sm:$0xff]
        %v340 = vld [vmem:[%s338 + $0x8] sm:$0xff]
        %v341 = vld [vmem:[%s338 + $0x18] sm:$0xff]
        %v342 = vld [vmem:[%s338 + $0x20] sm:$0xff]
        %v343 = vld [vmem:[%s338 + $0x30] sm:$0xff]
        %v344 = vld [vmem:[%s338 + $0x38] sm:$0xff]
        %v345 = vld [vmem:[%s338 + $0x48] sm:$0xff]
        %v346 = vld [vmem:[%s338 + $0x50] sm:$0xff]
        %v347 = vld [vmem:[%s338 + $0x60] sm:$0xff]
        %v348 = vld [vmem:[%s338 + $0x68] sm:$0xff]
        %v349 = vld [vmem:[%s338 + $0x78] sm:$0xff]
        %v350 = vld [vmem:[%s338 + $0x80] sm:$0xff]
        %v351 = vld [vmem:[%s338 + $0x90] sm:$0xff]
        %v352 = vld [vmem:[%s338 + $0x98] sm:$0xff]
        %v353 = vld [vmem:[%s338 + $0xa8] sm:$0xff]
        %v354 = vld [vmem:[%s338 + $0xb0] sm:$0xff]
        %v355 = vld [vmem:[%s338 + $0x1] sm:$0xff]
        %v356 = vld [vmem:[%s338 + $0x9] sm:$0xff]
        %v357 = vld [vmem:[%s338 + $0x19] sm:$0xff]
        %v358 = vld [vmem:[%s338 + $0x21] sm:$0xff]
        %v359 = vld [vmem:[%s338 + $0x31] sm:$0xff]
        %v360 = vld [vmem:[%s338 + $0x39] sm:$0xff]
        %v361 = vld [vmem:[%s338 + $0x49] sm:$0xff]
        %v362 = vld [vmem:[%s338 + $0x51] sm:$0xff]
        %v363 = vld [vmem:[%s338 + $0x61] sm:$0xff]
        %v364 = vld [vmem:[%s338 + $0x69] sm:$0xff]
        %v365 = vld [vmem:[%s338 + $0x79] sm:$0xff]
        %v366 = vld [vmem:[%s338 + $0x81] sm:$0xff]
        %v367 = vld [vmem:[%s338 + $0x91] sm:$0xff]
        %v368 = vld [vmem:[%s338 + $0x99] sm:$0xff]
        %v369 = vld [vmem:[%s338 + $0xa9] sm:$0xff]
        %v370 = vld [vmem:[%s338 + $0xb1] sm:$0xff]
        %v371 = vld [vmem:[%s338 + $0x2] sm:$0xff]
        %v372 = vld [vmem:[%s338 + $0xa] sm:$0xff]
        %v373 = vld [vmem:[%s338 + $0x1a] sm:$0xff]
        %v374 = vld [vmem:[%s338 + $0x22] sm:$0xff]
        %v375 = vld [vmem:[%s338 + $0x32] sm:$0xff]
        %v376 = vld [vmem:[%s338 + $0x3a] sm:$0xff]
        %v377 = vld [vmem:[%s338 + $0x4a] sm:$0xff]
        %v378 = vld [vmem:[%s338 + $0x52] sm:$0xff]
        %v379 = vld [vmem:[%s338 + $0x62] sm:$0xff]
        %v380 = vld [vmem:[%s338 + $0x6a] sm:$0xff]
        %v381 = vld [vmem:[%s338 + $0x7a] sm:$0xff]
        %v382 = vld [vmem:[%s338 + $0x82] sm:$0xff]
        %v383 = vld [vmem:[%s338 + $0x92] sm:$0xff]
        %v384 = vld [vmem:[%s338 + $0x9a] sm:$0xff]
        %v385 = vld [vmem:[%s338 + $0xaa] sm:$0xff]
        %v386 = vld [vmem:[%s338 + $0xb2] sm:$0xff]
        %403 = vrot.lane.b32.xlu0 %v253, 4
        %v404 = vpop.permute.xlu0 %403
        %405 = vrot.lane.b32.xlu0 %v254, 4
        %v406 = vpop.permute.xlu0 %405
        %407 = vrot.lane.b32.xlu0 %v255, 4
        %v408 = vpop.permute.xlu0 %407
        %409 = vrot.lane.b32.xlu0 %v256, 4
        %v410 = vpop.permute.xlu0 %409
        %411 = vrot.lane.b32.xlu0 %v257, 4
        %v412 = vpop.permute.xlu0 %411
        %413 = vrot.lane.b32.xlu0 %v258, 4
        %v414 = vpop.permute.xlu0 %413
        %415 = vrot.lane.b32.xlu0 %v259, 4
        %v416 = vpop.permute.xlu0 %415
        %417 = vrot.lane.b32.xlu0 %v260, 4
        %v418 = vpop.permute.xlu0 %417
        %419 = vrot.lane.b32.xlu0 %v261, 4
        %v420 = vpop.permute.xlu0 %419
        %421 = vrot.lane.b32.xlu0 %v262, 4
        %v422 = vpop.permute.xlu0 %421
        %423 = vrot.lane.b32.xlu0 %v263, 4
        %v424 = vpop.permute.xlu0 %423
        %425 = vrot.lane.b32.xlu0 %v264, 4
        %v426 = vpop.permute.xlu0 %425
        %427 = vrot.lane.b32.xlu0 %v265, 4
        %v428 = vpop.permute.xlu0 %427
        %429 = vrot.lane.b32.xlu0 %v266, 4
        %v430 = vpop.permute.xlu0 %429
        %431 = vrot.lane.b32.xlu0 %v267, 4
        %v432 = vpop.permute.xlu0 %431
        %433 = vrot.lane.b32.xlu0 %v268, 4
        %v434 = vpop.permute.xlu0 %433
        %467 = vrot.lane.b32.xlu0 %v269, 8
        %v468 = vpop.permute.xlu0 %467
        %469 = vrot.lane.b32.xlu0 %v270, 8
        %v470 = vpop.permute.xlu0 %469
        %471 = vrot.lane.b32.xlu0 %v271, 8
        %v472 = vpop.permute.xlu0 %471
        %473 = vrot.lane.b32.xlu0 %v272, 8
        %v474 = vpop.permute.xlu0 %473
        %475 = vrot.lane.b32.xlu0 %v273, 8
        %v476 = vpop.permute.xlu0 %475
        %477 = vrot.lane.b32.xlu0 %v274, 8
        %v478 = vpop.permute.xlu0 %477
        %479 = vrot.lane.b32.xlu0 %v275, 8
        %v480 = vpop.permute.xlu0 %479
        %481 = vrot.lane.b32.xlu0 %v276, 8
        %v482 = vpop.permute.xlu0 %481
        %483 = vrot.lane.b32.xlu0 %v277, 8
        %v484 = vpop.permute.xlu0 %483
        %485 = vrot.lane.b32.xlu0 %v278, 8
        %v486 = vpop.permute.xlu0 %485
        %487 = vrot.lane.b32.xlu0 %v279, 8
        %v488 = vpop.permute.xlu0 %487
        %489 = vrot.lane.b32.xlu0 %v280, 8
        %v490 = vpop.permute.xlu0 %489
        %491 = vrot.lane.b32.xlu0 %v281, 8
        %v492 = vpop.permute.xlu0 %491
        %493 = vrot.lane.b32.xlu0 %v282, 8
        %v494 = vpop.permute.xlu0 %493
        %495 = vrot.lane.b32.xlu0 %v283, 8
        %v496 = vpop.permute.xlu0 %495
        %497 = vrot.lane.b32.xlu0 %v284, 8
        %v498 = vpop.permute.xlu0 %497
        %531 = vrot.lane.b32.xlu0 %v288, 12
        %v532 = vpop.permute.xlu0 %531
        %533 = vrot.lane.b32.xlu0 %v289, 12
        %v534 = vpop.permute.xlu0 %533
        %535 = vrot.lane.b32.xlu0 %v290, 12
        %v536 = vpop.permute.xlu0 %535
        %537 = vrot.lane.b32.xlu0 %v291, 12
        %v538 = vpop.permute.xlu0 %537
        %539 = vrot.lane.b32.xlu0 %v292, 12
        %v540 = vpop.permute.xlu0 %539
        %541 = vrot.lane.b32.xlu0 %v293, 12
        %v542 = vpop.permute.xlu0 %541
        %543 = vrot.lane.b32.xlu0 %v294, 12
        %v544 = vpop.permute.xlu0 %543
        %545 = vrot.lane.b32.xlu0 %v295, 12
        %v546 = vpop.permute.xlu0 %545
        %547 = vrot.lane.b32.xlu0 %v296, 12
        %v548 = vpop.permute.xlu0 %547
        %549 = vrot.lane.b32.xlu0 %v297, 12
        %v550 = vpop.permute.xlu0 %549
        %551 = vrot.lane.b32.xlu0 %v298, 12
        %v552 = vpop.permute.xlu0 %551
        %553 = vrot.lane.b32.xlu0 %v299, 12
        %v554 = vpop.permute.xlu0 %553
        %555 = vrot.lane.b32.xlu0 %v300, 12
        %v556 = vpop.permute.xlu0 %555
        %557 = vrot.lane.b32.xlu0 %v301, 12
        %v558 = vpop.permute.xlu0 %557
        %559 = vrot.lane.b32.xlu0 %v302, 12
        %v560 = vpop.permute.xlu0 %559
        %561 = vrot.lane.b32.xlu0 %v303, 12
        %v562 = vpop.permute.xlu0 %561
        %595 = vrot.lane.b32.xlu0 %v304, 16
        %v596 = vpop.permute.xlu0 %595
        %597 = vrot.lane.b32.xlu0 %v305, 16
        %v598 = vpop.permute.xlu0 %597
        %599 = vrot.lane.b32.xlu0 %v306, 16
        %v600 = vpop.permute.xlu0 %599
        %601 = vrot.lane.b32.xlu0 %v307, 16
        %v602 = vpop.permute.xlu0 %601
        %603 = vrot.lane.b32.xlu0 %v308, 16
        %v604 = vpop.permute.xlu0 %603
        %605 = vrot.lane.b32.xlu0 %v309, 16
        %v606 = vpop.permute.xlu0 %605
        %607 = vrot.lane.b32.xlu0 %v310, 16
        %v608 = vpop.permute.xlu0 %607
        %609 = vrot.lane.b32.xlu0 %v311, 16
        %v610 = vpop.permute.xlu0 %609
        %611 = vrot.lane.b32.xlu0 %v312, 16
        %v612 = vpop.permute.xlu0 %611
        %613 = vrot.lane.b32.xlu0 %v313, 16
        %v614 = vpop.permute.xlu0 %613
        %615 = vrot.lane.b32.xlu0 %v314, 16
        %v616 = vpop.permute.xlu0 %615
        %617 = vrot.lane.b32.xlu0 %v315, 16
        %v618 = vpop.permute.xlu0 %617
        %619 = vrot.lane.b32.xlu0 %v316, 16
        %v620 = vpop.permute.xlu0 %619
        %621 = vrot.lane.b32.xlu0 %v317, 16
        %v622 = vpop.permute.xlu0 %621
        %623 = vrot.lane.b32.xlu0 %v318, 16
        %v624 = vpop.permute.xlu0 %623
        %625 = vrot.lane.b32.xlu0 %v319, 16
        %v626 = vpop.permute.xlu0 %625
        %659 = vrot.lane.b32.xlu0 %v320, 20
        %v660 = vpop.permute.xlu0 %659
        %661 = vrot.lane.b32.xlu0 %v321, 20
        %v662 = vpop.permute.xlu0 %661
        %663 = vrot.lane.b32.xlu0 %v322, 20
        %v664 = vpop.permute.xlu0 %663
        %665 = vrot.lane.b32.xlu0 %v323, 20
        %v666 = vpop.permute.xlu0 %665
        %667 = vrot.lane.b32.xlu0 %v324, 20
        %v668 = vpop.permute.xlu0 %667
        %669 = vrot.lane.b32.xlu0 %v325, 20
        %v670 = vpop.permute.xlu0 %669
        %671 = vrot.lane.b32.xlu0 %v326, 20
        %v672 = vpop.permute.xlu0 %671
        %673 = vrot.lane.b32.xlu0 %v327, 20
        %v674 = vpop.permute.xlu0 %673
        %675 = vrot.lane.b32.xlu0 %v328, 20
        %v676 = vpop.permute.xlu0 %675
        %677 = vrot.lane.b32.xlu0 %v329, 20
        %v678 = vpop.permute.xlu0 %677
        %679 = vrot.lane.b32.xlu0 %v330, 20
        %v680 = vpop.permute.xlu0 %679
        %681 = vrot.lane.b32.xlu0 %v331, 20
        %v682 = vpop.permute.xlu0 %681
        %683 = vrot.lane.b32.xlu0 %v332, 20
        %v684 = vpop.permute.xlu0 %683
        %685 = vrot.lane.b32.xlu0 %v333, 20
        %v686 = vpop.permute.xlu0 %685
        %687 = vrot.lane.b32.xlu0 %v334, 20
        %v688 = vpop.permute.xlu0 %687
        %689 = vrot.lane.b32.xlu0 %v335, 20
        %v690 = vpop.permute.xlu0 %689
        %723 = vrot.lane.b32.xlu0 %v339, 24
        %v724 = vpop.permute.xlu0 %723
        %725 = vrot.lane.b32.xlu0 %v340, 24
        %v726 = vpop.permute.xlu0 %725
        %727 = vrot.lane.b32.xlu0 %v341, 24
        %v728 = vpop.permute.xlu0 %727
        %729 = vrot.lane.b32.xlu0 %v342, 24
        %v730 = vpop.permute.xlu0 %729
        %731 = vrot.lane.b32.xlu0 %v343, 24
        %v732 = vpop.permute.xlu0 %731
        %733 = vrot.lane.b32.xlu0 %v344, 24
        %v734 = vpop.permute.xlu0 %733
        %735 = vrot.lane.b32.xlu0 %v345, 24
        %v736 = vpop.permute.xlu0 %735
        %737 = vrot.lane.b32.xlu0 %v346, 24
        %v738 = vpop.permute.xlu0 %737
        %739 = vrot.lane.b32.xlu0 %v347, 24
        %v740 = vpop.permute.xlu0 %739
        %741 = vrot.lane.b32.xlu0 %v348, 24
        %v742 = vpop.permute.xlu0 %741
        %743 = vrot.lane.b32.xlu0 %v349, 24
        %v744 = vpop.permute.xlu0 %743
        %745 = vrot.lane.b32.xlu0 %v350, 24
        %v746 = vpop.permute.xlu0 %745
        %747 = vrot.lane.b32.xlu0 %v351, 24
        %v748 = vpop.permute.xlu0 %747
        %749 = vrot.lane.b32.xlu0 %v352, 24
        %v750 = vpop.permute.xlu0 %749
        %751 = vrot.lane.b32.xlu0 %v353, 24
        %v752 = vpop.permute.xlu0 %751
        %753 = vrot.lane.b32.xlu0 %v354, 24
        %v754 = vpop.permute.xlu0 %753
        %787 = vrot.lane.b32.xlu0 %v355, 28
        %v788 = vpop.permute.xlu0 %787
        %789 = vrot.lane.b32.xlu0 %v356, 28
        %v790 = vpop.permute.xlu0 %789
        %791 = vrot.lane.b32.xlu0 %v357, 28
        %v792 = vpop.permute.xlu0 %791
        %793 = vrot.lane.b32.xlu0 %v358, 28
        %v794 = vpop.permute.xlu0 %793
        %795 = vrot.lane.b32.xlu0 %v359, 28
        %v796 = vpop.permute.xlu0 %795
        %797 = vrot.lane.b32.xlu0 %v360, 28
        %v798 = vpop.permute.xlu0 %797
        %799 = vrot.lane.b32.xlu0 %v361, 28
        %v800 = vpop.permute.xlu0 %799
        %801 = vrot.lane.b32.xlu0 %v362, 28
        %v802 = vpop.permute.xlu0 %801
        %803 = vrot.lane.b32.xlu0 %v363, 28
        %v804 = vpop.permute.xlu0 %803
        %805 = vrot.lane.b32.xlu0 %v364, 28
        %v806 = vpop.permute.xlu0 %805
        %807 = vrot.lane.b32.xlu0 %v365, 28
        %v808 = vpop.permute.xlu0 %807
        %809 = vrot.lane.b32.xlu0 %v366, 28
        %v810 = vpop.permute.xlu0 %809
        %811 = vrot.lane.b32.xlu0 %v367, 28
        %v812 = vpop.permute.xlu0 %811
        %813 = vrot.lane.b32.xlu0 %v368, 28
        %v814 = vpop.permute.xlu0 %813
        %815 = vrot.lane.b32.xlu0 %v369, 28
        %v816 = vpop.permute.xlu0 %815
        %817 = vrot.lane.b32.xlu0 %v370, 28
        %v818 = vpop.permute.xlu0 %817
        %851 = vrot.lane.b32.xlu0 %v371, 32
        %v852 = vpop.permute.xlu0 %851
        %853 = vrot.lane.b32.xlu0 %v372, 32
        %v854 = vpop.permute.xlu0 %853
        %855 = vrot.lane.b32.xlu0 %v373, 32
        %v856 = vpop.permute.xlu0 %855
        %857 = vrot.lane.b32.xlu0 %v374, 32
        %v858 = vpop.permute.xlu0 %857
        %859 = vrot.lane.b32.xlu0 %v375, 32
        %v860 = vpop.permute.xlu0 %859
        %861 = vrot.lane.b32.xlu0 %v376, 32
        %v862 = vpop.permute.xlu0 %861
        %863 = vrot.lane.b32.xlu0 %v377, 32
        %v864 = vpop.permute.xlu0 %863
        %865 = vrot.lane.b32.xlu0 %v378, 32
        %v866 = vpop.permute.xlu0 %865
        %867 = vrot.lane.b32.xlu0 %v379, 32
        %v868 = vpop.permute.xlu0 %867
        %869 = vrot.lane.b32.xlu0 %v380, 32
        %v870 = vpop.permute.xlu0 %869
        %871 = vrot.lane.b32.xlu0 %v381, 32
        %v872 = vpop.permute.xlu0 %871
        %873 = vrot.lane.b32.xlu0 %v382, 32
        %v874 = vpop.permute.xlu0 %873
        %875 = vrot.lane.b32.xlu0 %v383, 32
        %v876 = vpop.permute.xlu0 %875
        %877 = vrot.lane.b32.xlu0 %v384, 32
        %v878 = vpop.permute.xlu0 %877
        %879 = vrot.lane.b32.xlu0 %v385, 32
        %v880 = vpop.permute.xlu0 %879
        %881 = vrot.lane.b32.xlu0 %v386, 32
        %v882 = vpop.permute.xlu0 %881
        %vm899 = vcmask 31744
        %v900 = vsel %vm899, %v237, %v404
        %v901 = vsel %vm899, %v238, %v406
        %v902 = vsel %vm899, %v239, %v408
        %v903 = vsel %vm899, %v240, %v410
        %v904 = vsel %vm899, %v241, %v412
        %v905 = vsel %vm899, %v242, %v414
        %v906 = vsel %vm899, %v243, %v416
        %v907 = vsel %vm899, %v244, %v418
        %v908 = vsel %vm899, %v245, %v420
        %v909 = vsel %vm899, %v246, %v422
        %v910 = vsel %vm899, %v247, %v424
        %v911 = vsel %vm899, %v248, %v426
        %v912 = vsel %vm899, %v249, %v428
        %v913 = vsel %vm899, %v250, %v430
        %v914 = vsel %vm899, %v251, %v432
        %v915 = vsel %vm899, %v252, %v434
        %vm916 = vcmask 64512
        %v917 = vsel %vm916, %v900, %v468
        %v918 = vsel %vm916, %v901, %v470
        %v919 = vsel %vm916, %v902, %v472
        %v920 = vsel %vm916, %v903, %v474
        %v921 = vsel %vm916, %v904, %v476
        %v922 = vsel %vm916, %v905, %v478
        %v923 = vsel %vm916, %v906, %v480
        %v924 = vsel %vm916, %v907, %v482
        %v925 = vsel %vm916, %v908, %v484
        %v926 = vsel %vm916, %v909, %v486
        %v927 = vsel %vm916, %v910, %v488
        %v928 = vsel %vm916, %v911, %v490
        %v929 = vsel %vm916, %v912, %v492
        %v930 = vsel %vm916, %v913, %v494
        %v931 = vsel %vm916, %v914, %v496
        %v932 = vsel %vm916, %v915, %v498
        %vm933 = vcmask 97280
        %v934 = vsel %vm933, %v917, %v532
        %v935 = vsel %vm933, %v918, %v534
        %v936 = vsel %vm933, %v919, %v536
        %v937 = vsel %vm933, %v920, %v538
        %v938 = vsel %vm933, %v921, %v540
        %v939 = vsel %vm933, %v922, %v542
        %v940 = vsel %vm933, %v923, %v544
        %v941 = vsel %vm933, %v924, %v546
        %v942 = vsel %vm933, %v925, %v548
        %v943 = vsel %vm933, %v926, %v550
        %v944 = vsel %vm933, %v927, %v552
        %v945 = vsel %vm933, %v928, %v554
        %v946 = vsel %vm933, %v929, %v556
        %v947 = vsel %vm933, %v930, %v558
        %v948 = vsel %vm933, %v931, %v560
        %v949 = vsel %vm933, %v932, %v562
        %vm950 = vcmask 130048
        %v951 = vsel %vm950, %v934, %v596
        %v952 = vsel %vm950, %v935, %v598
        %v953 = vsel %vm950, %v936, %v600
        %v954 = vsel %vm950, %v937, %v602
        %v955 = vsel %vm950, %v938, %v604
        %v956 = vsel %vm950, %v939, %v606
        %v957 = vsel %vm950, %v940, %v608
        %v958 = vsel %vm950, %v941, %v610
        %v959 = vsel %vm950, %v942, %v612
        %v960 = vsel %vm950, %v943, %v614
        %v961 = vsel %vm950, %v944, %v616
        %v962 = vsel %vm950, %v945, %v618
        %v963 = vsel %vm950, %v946, %v620
        %v964 = vsel %vm950, %v947, %v622
        %v965 = vsel %vm950, %v948, %v624
        %v966 = vsel %vm950, %v949, %v626
        %vm967 = vcmask 162816
        %v968 = vsel %vm967, %v951, %v660
        %v969 = vsel %vm967, %v952, %v662
        %v970 = vsel %vm967, %v953, %v664
        %v971 = vsel %vm967, %v954, %v666
        %v972 = vsel %vm967, %v955, %v668
        %v973 = vsel %vm967, %v956, %v670
        %v974 = vsel %vm967, %v957, %v672
        %v975 = vsel %vm967, %v958, %v674
        %v976 = vsel %vm967, %v959, %v676
        %v977 = vsel %vm967, %v960, %v678
        %v978 = vsel %vm967, %v961, %v680
        %v979 = vsel %vm967, %v962, %v682
        %v980 = vsel %vm967, %v963, %v684
        %v981 = vsel %vm967, %v964, %v686
        %v982 = vsel %vm967, %v965, %v688
        %v983 = vsel %vm967, %v966, %v690
        %vm984 = vcmask 195584
        %v985 = vsel %vm984, %v968, %v724
        %v986 = vsel %vm984, %v969, %v726
        %v987 = vsel %vm984, %v970, %v728
        %v988 = vsel %vm984, %v971, %v730
        %v989 = vsel %vm984, %v972, %v732
        %v990 = vsel %vm984, %v973, %v734
        %v991 = vsel %vm984, %v974, %v736
        %v992 = vsel %vm984, %v975, %v738
        %v993 = vsel %vm984, %v976, %v740
        %v994 = vsel %vm984, %v977, %v742
        %v995 = vsel %vm984, %v978, %v744
        %v996 = vsel %vm984, %v979, %v746
        %v997 = vsel %vm984, %v980, %v748
        %v998 = vsel %vm984, %v981, %v750
        %v999 = vsel %vm984, %v982, %v752
        %v1000 = vsel %vm984, %v983, %v754
        %vm1001 = vcmask 228352
        %v1002 = vsel %vm1001, %v985, %v788
        %v1003 = vsel %vm1001, %v986, %v790
        %v1004 = vsel %vm1001, %v987, %v792
        %v1005 = vsel %vm1001, %v988, %v794
        %v1006 = vsel %vm1001, %v989, %v796
        %v1007 = vsel %vm1001, %v990, %v798
        %v1008 = vsel %vm1001, %v991, %v800
        %v1009 = vsel %vm1001, %v992, %v802
        %v1010 = vsel %vm1001, %v993, %v804
        %v1011 = vsel %vm1001, %v994, %v806
        %v1012 = vsel %vm1001, %v995, %v808
        %v1013 = vsel %vm1001, %v996, %v810
        %v1014 = vsel %vm1001, %v997, %v812
        %v1015 = vsel %vm1001, %v998, %v814
        %v1016 = vsel %vm1001, %v999, %v816
        %v1017 = vsel %vm1001, %v1000, %v818
        %vm1018 = vcmask 261120
        %v1019 = vsel %vm1018, %v1002, %v852
        %v1020 = vsel %vm1018, %v1003, %v854
        %v1021 = vsel %vm1018, %v1004, %v856
        %v1022 = vsel %vm1018, %v1005, %v858
        %v1023 = vsel %vm1018, %v1006, %v860
        %v1024 = vsel %vm1018, %v1007, %v862
        %v1025 = vsel %vm1018, %v1008, %v864
        %v1026 = vsel %vm1018, %v1009, %v866
        %v1027 = vsel %vm1018, %v1010, %v868
        %v1028 = vsel %vm1018, %v1011, %v870
        %v1029 = vsel %vm1018, %v1012, %v872
        %v1030 = vsel %vm1018, %v1013, %v874
        %v1031 = vsel %vm1018, %v1014, %v876
        %v1032 = vsel %vm1018, %v1015, %v878
        %v1033 = vsel %vm1018, %v1016, %v880
        %v1034 = vsel %vm1018, %v1017, %v882
        %v1035 = vpack.c.bf16 %v1020, %v1019
        %v1036 = vpack.c.bf16 %v1022, %v1021
        %v1037 = vpack.c.bf16 %v1024, %v1023
        %v1038 = vpack.c.bf16 %v1026, %v1025
        %v1039 = vpack.c.bf16 %v1028, %v1027
        %v1040 = vpack.c.bf16 %v1030, %v1029
        %v1041 = vpack.c.bf16 %v1032, %v1031
        %v1042 = vpack.c.bf16 %v1034, %v1033
        %v1043 = vld [vmem:[%s1] sm:$0xf]
        %v1044 = vld [vmem:[%s1 + $0x4] sm:$0xf]
        %v1045 = vld [vmem:[%s1 + $0x8] sm:$0xf]
        %v1046 = vld [vmem:[%s1 + $0xc] sm:$0xf]
        %v1047 = vld [vmem:[%s1 + $0x10] sm:$0x3]
        %v1053 = vunpack.c.l.b16 %v1043
        %v1054 = vunpack.c.l.b16 %v1044
        %v1055 = vunpack.c.l.b16 %v1045
        %v1056 = vunpack.c.l.b16 %v1046
        %v1057 = vunpack.c.l.b16 %v1047
        %v1058 = vpack.c.b16 %v1054, %v1053
        %v1059 = vpack.c.b16 %v1056, %v1055
        %v1060 = vpack.c.b16 %v1057, %v1057
        %vm1063 = vcmask 293888
        %v1065 = vsel %vm1063, %v1035, 0
        %v1068 = vsel %vm1063, %v1036, 0
        %v1071 = vsel %vm1063, %v1037, 0
        %v1074 = vsel %vm1063, %v1038, 0
        %v1077 = vsel %vm1063, %v1039, 0
        %v1080 = vsel %vm1063, %v1040, 0
        %v1083 = vsel %vm1063, %v1041, 0
        %v1086 = vsel %vm1063, %v1042, 0
        %vm1088 = vcmask 1041408
        %v1090 = vsel %vm1088, %v1060, 0
        %1092 = vmatprep.subr.bf16.mxu0 0
        %1093 = vmatpush1.bf16.msra.mxu0 0
        %1094 = vmatprep.subr.bf16.mxu0 0
        %1095 = vmatpush1.bf16.msra.mxu0 0
        %1096 = vmatprep.subr.bf16.mxu0 0
        %1097 = vmatpush1.bf16.msra.mxu0 0
        %1098 = vmatprep.subr.bf16.mxu0 0
        %1099 = vmatpush1.bf16.msra.mxu0 0
        %1100 = vmatprep.subr.bf16.mxu0 0
        %1101 = vmatpush1.bf16.msra.mxu0 0
        %1102 = vmatprep.subr.bf16.mxu0 0
        %1103 = vmatpush1.bf16.msra.mxu0 %v1090
        %1104 = vmatprep.subr.bf16.mxu0 0
        %1105 = vmatpush1.bf16.msra.mxu0 %v1059
        %1106 = vmatprep.subr.bf16.mxu0 0
        %1107 = vmatpush1.bf16.msra.mxu0 %v1058
        %1108 = vmatprep.subr.bf16.mxu0 0
        %1109 = vmatpush2.bf16.msra.mxu0 0
        %1110 = vmatprep.subr.bf16.mxu0 0
        %1111 = vmatpush2.bf16.msra.mxu0 0
        %1112 = vmatprep.subr.bf16.mxu0 0
        %1113 = vmatpush2.bf16.msra.mxu0 0
        %1114 = vmatprep.subr.bf16.mxu0 0
        %1115 = vmatpush2.bf16.msra.mxu0 0
        %1116 = vmatprep.subr.bf16.mxu0 0
        %1117 = vmatpush2.bf16.msra.mxu0 0
        %1118 = vmatprep.subr.bf16.mxu0 0
        %1119 = vmatpush2.bf16.msra.mxu0 0
        %1120 = vmatprep.subr.bf16.mxu0 0
        %1121 = vmatpush2.bf16.msra.mxu0 0
        %1122 = vmatprep.subr.bf16.mxu0 0
        %1123 = vmatpush2.bf16.msra.mxu0 0
        %1124 = vmatprep.mubr.bf16.mxu0 0
        %1125 = vmatmul.mubr.bf16.gmra.mxu0 %v1065
        %v1126 = vpop.f32.mrf.mxu0
        %v1127 = vadd.f32 0.0, %v1126
        %v1128 = vpop.f32.mrf.mxu0
        %v1129 = vpop.f32.mrf.mxu0
        %v1130 = vadd.f32 0.0, %v1129
        %v1131 = vpop.f32.mrf.mxu0
        %1132 = vmatprep.mubr.bf16.mxu0 0
        %1133 = vmatmul.mubr.bf16.gmra.mxu0 %v1068
        %v1134 = vpop.f32.mrf.mxu0
        %v1135 = vadd.f32 0.0, %v1134
        %v1136 = vpop.f32.mrf.mxu0
        %v1137 = vpop.f32.mrf.mxu0
        %v1138 = vadd.f32 0.0, %v1137
        %v1139 = vpop.f32.mrf.mxu0
        %1140 = vmatprep.mubr.bf16.mxu0 0
        %1141 = vmatmul.mubr.bf16.gmra.mxu0 %v1071
        %v1142 = vpop.f32.mrf.mxu0
        %v1143 = vadd.f32 0.0, %v1142
        %v1144 = vpop.f32.mrf.mxu0
        %v1145 = vpop.f32.mrf.mxu0
        %v1146 = vadd.f32 0.0, %v1145
        %v1147 = vpop.f32.mrf.mxu0
        %1148 = vmatprep.mubr.bf16.mxu0 0
        %1149 = vmatmul.mubr.bf16.gmra.mxu0 %v1074
        %v1150 = vpop.f32.mrf.mxu0
        %v1151 = vadd.f32 0.0, %v1150
        %v1152 = vpop.f32.mrf.mxu0
        %v1153 = vpop.f32.mrf.mxu0
        %v1154 = vadd.f32 0.0, %v1153
        %v1155 = vpop.f32.mrf.mxu0
        %1156 = vmatprep.mubr.bf16.mxu0 0
        %1157 = vmatmul.mubr.bf16.gmra.mxu0 %v1077
        %v1158 = vpop.f32.mrf.mxu0
        %v1159 = vadd.f32 0.0, %v1158
        %v1160 = vpop.f32.mrf.mxu0
        %v1161 = vpop.f32.mrf.mxu0
        %v1162 = vadd.f32 0.0, %v1161
        %v1163 = vpop.f32.mrf.mxu0
        %1164 = vmatprep.mubr.bf16.mxu0 0
        %1165 = vmatmul.mubr.bf16.gmra.mxu0 %v1080
        %v1166 = vpop.f32.mrf.mxu0
        %v1167 = vadd.f32 0.0, %v1166
        %v1168 = vpop.f32.mrf.mxu0
        %v1169 = vpop.f32.mrf.mxu0
        %v1170 = vadd.f32 0.0, %v1169
        %v1171 = vpop.f32.mrf.mxu0
        %1172 = vmatprep.mubr.bf16.mxu0 0
        %1173 = vmatmul.mubr.bf16.gmra.mxu0 %v1083
        %v1174 = vpop.f32.mrf.mxu0
        %v1175 = vadd.f32 0.0, %v1174
        %v1176 = vpop.f32.mrf.mxu0
        %v1177 = vpop.f32.mrf.mxu0
        %v1178 = vadd.f32 0.0, %v1177
        %v1179 = vpop.f32.mrf.mxu0
        %1180 = vmatprep.mubr.bf16.mxu0 0
        %1181 = vmatmul.mubr.bf16.gmra.mxu0 %v1086
        %v1182 = vpop.f32.mrf.mxu0
        %v1183 = vadd.f32 0.0, %v1182
        %v1184 = vpop.f32.mrf.mxu0
        %v1185 = vpop.f32.mrf.mxu0
        %v1186 = vadd.f32 0.0, %v1185
        %v1187 = vpop.f32.mrf.mxu0
        %1188 = vdwg.mxu0
        %1189 = vst.msk [vmem:[%s216] sm:$0xff] %vm916, %v1127
        %1190 = vst.msk [vmem:[%s216 + $0x8] sm:$0xff] %vm916, %v1130
        %1191 = vst.msk [vmem:[%s216 + $0x10] sm:$0xff] %vm916, %v1135
        %1192 = vst.msk [vmem:[%s216 + $0x18] sm:$0xff] %vm916, %v1138
        %1193 = vst.msk [vmem:[%s216 + $0x20] sm:$0xff] %vm916, %v1143
        %1194 = vst.msk [vmem:[%s216 + $0x28] sm:$0xff] %vm916, %v1146
        %1195 = vst.msk [vmem:[%s216 + $0x30] sm:$0xff] %vm916, %v1151
        %1196 = vst.msk [vmem:[%s216 + $0x38] sm:$0xff] %vm916, %v1154
        %1197 = vst.msk [vmem:[%s216 + $0x40] sm:$0xff] %vm916, %v1159
        %1198 = vst.msk [vmem:[%s216 + $0x48] sm:$0xff] %vm916, %v1162
        %1199 = vst.msk [vmem:[%s216 + $0x50] sm:$0xff] %vm916, %v1167
        %1200 = vst.msk [vmem:[%s216 + $0x58] sm:$0xff] %vm916, %v1170
        %1201 = vst.msk [vmem:[%s216 + $0x60] sm:$0xff] %vm916, %v1175
        %1202 = vst.msk [vmem:[%s216 + $0x68] sm:$0xff] %vm916, %v1178
        %1203 = vst.msk [vmem:[%s216 + $0x70] sm:$0xff] %vm916, %v1183
        %1204 = vst.msk [vmem:[%s216 + $0x78] sm:$0xff] %vm916, %v1186
        %v1205 = vld [vmem:[#allocation2] sm:$0xff]
        %1206 = vmatprep.subr.mxu0 0.0
        %1207 = vmatpush1.msra.mxu0 %v1186
        %1208 = vmatprep.subr.mxu0 0.0
        %1209 = vmatpush1.msra.mxu0 %v1183
        %1210 = vmatprep.subr.mxu0 0.0
        %1211 = vmatpush1.msra.mxu0 %v1178
        %1212 = vmatprep.subr.mxu0 0.0
        %1213 = vmatpush1.msra.mxu0 %v1175
        %1214 = vmatprep.subr.mxu0 0.0
        %1215 = vmatpush1.msra.mxu0 %v1170
        %1216 = vmatprep.subr.mxu0 0.0
        %1217 = vmatpush1.msra.mxu0 %v1167
        %1218 = vmatprep.subr.mxu0 0.0
        %1219 = vmatpush1.msra.mxu0 %v1162
        %1220 = vmatprep.subr.mxu0 0.0
        %1221 = vmatpush1.msra.mxu0 %v1159
        %1222 = vmatprep.subr.mxu0 0.0
        %1223 = vmatpush1.msra.mxu0 %v1154
        %1224 = vmatprep.subr.mxu0 0.0
        %1225 = vmatpush1.msra.mxu0 %v1151
        %1226 = vmatprep.subr.mxu0 0.0
        %1227 = vmatpush1.msra.mxu0 %v1146
        %1228 = vmatprep.subr.mxu0 0.0
        %1229 = vmatpush1.msra.mxu0 %v1143
        %1230 = vmatprep.subr.mxu0 0.0
        %1231 = vmatpush1.msra.mxu0 %v1138
        %1232 = vmatprep.subr.mxu0 0.0
        %1233 = vmatpush1.msra.mxu0 %v1135
        %1234 = vmatprep.subr.mxu0 0.0
        %1235 = vmatpush1.msra.mxu0 %v1130
        %1236 = vmatprep.subr.mxu0 0.0
        %1237 = vmatpush1.msra.mxu0 %v1127
        %1238 = vmatprep.subr.mxu0 0.0
        %1239 = vmatpush2.msra.mxu0 0.0
        %1240 = vmatprep.subr.mxu0 0.0
        %1241 = vmatpush2.msra.mxu0 0.0
        %1242 = vmatprep.subr.mxu0 0.0
        %1243 = vmatpush2.msra.mxu0 0.0
        %1244 = vmatprep.subr.mxu0 0.0
        %1245 = vmatpush2.msra.mxu0 0.0
        %1246 = vmatprep.subr.mxu0 0.0
        %1247 = vmatpush2.msra.mxu0 0.0
        %1248 = vmatprep.subr.mxu0 0.0
        %1249 = vmatpush2.msra.mxu0 0.0
        %1250 = vmatprep.subr.mxu0 0.0
        %1251 = vmatpush2.msra.mxu0 0.0
        %1252 = vmatprep.subr.mxu0 0.0
        %1253 = vmatpush2.msra.mxu0 0.0
        %1254 = vmatprep.subr.mxu0 0.0
        %1255 = vmatpush2.msra.mxu0 0.0
        %1256 = vmatprep.subr.mxu0 0.0
        %1257 = vmatpush2.msra.mxu0 0.0
        %1258 = vmatprep.subr.mxu0 0.0
        %1259 = vmatpush2.msra.mxu0 0.0
        %1260 = vmatprep.subr.mxu0 0.0
        %1261 = vmatpush2.msra.mxu0 0.0
        %1262 = vmatprep.subr.mxu0 0.0
        %1263 = vmatpush2.msra.mxu0 0.0
        %1264 = vmatprep.subr.mxu0 0.0
        %1265 = vmatpush2.msra.mxu0 0.0
        %1266 = vmatprep.subr.mxu0 0.0
        %1267 = vmatpush2.msra.mxu0 0.0
        %1268 = vmatprep.subr.mxu0 0.0
        %1269 = vmatpush2.msra.mxu0 0.0
        %1270 = vmatprep.mubr.f32.mxu0 0.0
        %1271 = vmatmul.mubr.f32.gmra.mxu0 1.0
        %v1272 = vpop.f32.mrf.mxu0
        %v1273 = vadd.f32 0.0, %v1272
        %v1274 = vpop.f32.mrf.mxu0
        %1275 = vdwg.mxu0
        %v1276 = vadd.f32 %v1205, %v1273
        %1277 = vst.msk [vmem:[#allocation2] sm:$0xff] %vm916, %v1276
        %v1278 = vld [vmem:[#allocation3] sm:$0xff]
        %v1279 = vmul.f32 %v1127, %v1127
        %v1280 = vmul.f32 %v1130, %v1130
        %v1281 = vmul.f32 %v1135, %v1135
        %v1282 = vmul.f32 %v1138, %v1138
        %v1283 = vmul.f32 %v1143, %v1143
        %v1284 = vmul.f32 %v1146, %v1146
        %v1285 = vmul.f32 %v1151, %v1151
        %v1286 = vmul.f32 %v1154, %v1154
        %v1287 = vmul.f32 %v1159, %v1159
        %v1288 = vmul.f32 %v1162, %v1162
        %v1289 = vmul.f32 %v1167, %v1167
        %v1290 = vmul.f32 %v1170, %v1170
        %v1291 = vmul.f32 %v1175, %v1175
        %v1292 = vmul.f32 %v1178, %v1178
        %v1293 = vmul.f32 %v1183, %v1183
        %v1294 = vmul.f32 %v1186, %v1186
        %1295 = vmatprep.subr.mxu0 0.0
        %1296 = vmatpush1.msra.mxu0 %v1294
        %1297 = vmatprep.subr.mxu0 0.0
        %1298 = vmatpush1.msra.mxu0 %v1293
        %1299 = vmatprep.subr.mxu0 0.0
        %1300 = vmatpush1.msra.mxu0 %v1292
        %1301 = vmatprep.subr.mxu0 0.0
        %1302 = vmatpush1.msra.mxu0 %v1291
        %1303 = vmatprep.subr.mxu0 0.0
        %1304 = vmatpush1.msra.mxu0 %v1290
        %1305 = vmatprep.subr.mxu0 0.0
        %1306 = vmatpush1.msra.mxu0 %v1289
        %1307 = vmatprep.subr.mxu0 0.0
        %1308 = vmatpush1.msra.mxu0 %v1288
        %1309 = vmatprep.subr.mxu0 0.0
        %1310 = vmatpush1.msra.mxu0 %v1287
        %1311 = vmatprep.subr.mxu0 0.0
        %1312 = vmatpush1.msra.mxu0 %v1286
        %1313 = vmatprep.subr.mxu0 0.0
        %1314 = vmatpush1.msra.mxu0 %v1285
        %1315 = vmatprep.subr.mxu0 0.0
        %1316 = vmatpush1.msra.mxu0 %v1284
        %1317 = vmatprep.subr.mxu0 0.0
        %1318 = vmatpush1.msra.mxu0 %v1283
        %1319 = vmatprep.subr.mxu0 0.0
        %1320 = vmatpush1.msra.mxu0 %v1282
        %1321 = vmatprep.subr.mxu0 0.0
        %1322 = vmatpush1.msra.mxu0 %v1281
        %1323 = vmatprep.subr.mxu0 0.0
        %1324 = vmatpush1.msra.mxu0 %v1280
        %1325 = vmatprep.subr.mxu0 0.0
        %1326 = vmatpush1.msra.mxu0 %v1279
        %1327 = vmatprep.subr.mxu0 0.0
        %1328 = vmatpush2.msra.mxu0 0.0
        %1329 = vmatprep.subr.mxu0 0.0
        %1330 = vmatpush2.msra.mxu0 0.0
        %1331 = vmatprep.subr.mxu0 0.0
        %1332 = vmatpush2.msra.mxu0 0.0
        %1333 = vmatprep.subr.mxu0 0.0
        %1334 = vmatpush2.msra.mxu0 0.0
        %1335 = vmatprep.subr.mxu0 0.0
        %1336 = vmatpush2.msra.mxu0 0.0
        %1337 = vmatprep.subr.mxu0 0.0
        %1338 = vmatpush2.msra.mxu0 0.0
        %1339 = vmatprep.subr.mxu0 0.0
        %1340 = vmatpush2.msra.mxu0 0.0
        %1341 = vmatprep.subr.mxu0 0.0
        %1342 = vmatpush2.msra.mxu0 0.0
        %1343 = vmatprep.subr.mxu0 0.0
        %1344 = vmatpush2.msra.mxu0 0.0
        %1345 = vmatprep.subr.mxu0 0.0
        %1346 = vmatpush2.msra.mxu0 0.0
        %1347 = vmatprep.subr.mxu0 0.0
        %1348 = vmatpush2.msra.mxu0 0.0
        %1349 = vmatprep.subr.mxu0 0.0
        %1350 = vmatpush2.msra.mxu0 0.0
        %1351 = vmatprep.subr.mxu0 0.0
        %1352 = vmatpush2.msra.mxu0 0.0
        %1353 = vmatprep.subr.mxu0 0.0
        %1354 = vmatpush2.msra.mxu0 0.0
        %1355 = vmatprep.subr.mxu0 0.0
        %1356 = vmatpush2.msra.mxu0 0.0
        %1357 = vmatprep.subr.mxu0 0.0
        %1358 = vmatpush2.msra.mxu0 0.0
        %1359 = vmatprep.mubr.f32.mxu0 0.0
        %1360 = vmatmul.mubr.f32.gmra.mxu0 1.0
        %v1361 = vpop.f32.mrf.mxu0
        %v1362 = vadd.f32 0.0, %v1361
        %v1363 = vpop.f32.mrf.mxu0
        %1364 = vdwg.mxu0
        %v1365 = vadd.f32 %v1278, %v1362
        %1366 = vst.msk [vmem:[#allocation3] sm:$0xff] %vm916, %v1365
        // Predicated region
        $region37: #{tpu_custom_call.1} parent=31 // pred_check
          _
        $region38: #{tpu_custom_call.1} parent=31 // pred_check_branch
          %1368 = sbr.rel (%p227) target = $region40
        $region39: #{tpu_custom_call.1} parent=31 // pred_region
          %v1369 = vld [vmem:[#allocation2] sm:$0x1]
          %v1370 = vmul.f32 %v1369, 0.001953125
          %v1371 = vld [vmem:[#allocation3] sm:$0x1]
          %v1372 = vmul.f32 %v1371, 0.001953125
          %v1373 = vmul.f32 %v1370, %v1370
          %v1374 = vsub.f32 %v1372, %v1373
          %v1375 = vmax.f32 %v1374, 0.0
          %v1376 = vld [vmem:[%s2] sm:$0x1]
          %v1377 = vadd.f32 %v1375, 1e-05
          %v1378 = vrsqrt.pop %v1377
          %v1379 = vmul.f32 %v1376, %v1378
          %vm1380 = vcmask 57344
          %1381 = vst.msk [vmem:[#allocation4] sm:$0x1] %vm1380, %v1379
          %v1382 = vld [vmem:[%s2 + $0x1] sm:$0x1]
          %v1383 = vmul.f32 %v1370, %v1379
          %v1384 = vsub.f32 %v1382, %v1383
          %1385 = vst.msk [vmem:[#allocation4 + $0x1] sm:$0x1] %vm1380, %v1384
        $region40: #{tpu_custom_call.1} parent=31 // pred_fallthru
          _
        %s1386 = smul.u32 %s21, 2
        %s1387 = sadd.s32 %s1386, %s22
        %s1388 = smul.u32 16, %s1387
        %p1389 = scmp.lt.s32.totalorder %s1388, 63
        %s1390 = scalar_select %p1389, %s1388, 63
        %s1391 = smul.addr %s1390, 8
        %s1392 = scalar_lea.vmem %s3, %s1391
        // Predicated region
        $region41: #{tpu_custom_call.1} parent=31 // pred_check
          %p1393 = pneg %p119
        $region42: #{tpu_custom_call.1} parent=31 // pred_check_branch
          %1395 = sbr.rel (%p1393) target = $region44
        $region43: #{tpu_custom_call.1} parent=31 // pred_region
          %s1396 = smul.u32 %s21, 2
          %s1397 = sadd.s32 %s1396, %s22
          %s1398 = smul.u32 16, %s1397
        $region44: #{tpu_custom_call.1} parent=31 // pred_fallthru
          _
        // Predicated region
        $region45: #{tpu_custom_call.1} parent=31 // pred_check
          %p1399 = pneg %p140
        $region46: #{tpu_custom_call.1} parent=31 // pred_check_branch
          %1401 = sbr.rel (%p1399) target = $region48
        $region47: #{tpu_custom_call.1} parent=31 // pred_region
          %s1403 = ssub.s32 32, 32
          %1404 = vsyncadd [#allocation5], %s1403
          %s1406 = sshll.u32 [#allocation4], 4
          %s1407 = int_to_ptr.vmem [resolvable:$true] %s1406
          %1409 = dma.vmem_to_hbm [thread:$0]  %s1407, 32, %s4, [#allocation5]
        $region48: #{tpu_custom_call.1} parent=31 // pred_fallthru
          _
        // Predicated region
        $region49: #{tpu_custom_call.1} parent=31 // pred_check
          %p1410 = pneg %p140
        $region50: #{tpu_custom_call.1} parent=31 // pred_check_branch
          %1412 = sbr.rel (%p1410) target = $region52
        $region51: #{tpu_custom_call.1} parent=31 // pred_region
          %1413 = dma.done [#allocation5], 32
        $region52: #{tpu_custom_call.1} parent=31 // pred_fallthru
          _
      $region32: #{tpu_custom_call.1} parent=5 // pred_fallthru
        _
      %p1414 = scmp.le.s32.totalorder 2, %s12
      // Predicated region
      $region53: #{tpu_custom_call.1} parent=5 // pred_check
        %p1415 = pneg %p1414
      $region54: #{tpu_custom_call.1} parent=5 // pred_check_branch
        %1417 = sbr.rel (%p1415) target = $region56
      $region55: #{tpu_custom_call.1} parent=5 // pred_region
        %s1418 = ssub.s32 %s12, 2
        // Predicated region
        $region57: #{tpu_custom_call.1} parent=55 // pred_check
          %p1419 = pneg %p125
        $region58: #{tpu_custom_call.1} parent=55 // pred_check_branch
          %1421 = sbr.rel (%p1419) target = $region60
        $region59: #{tpu_custom_call.1} parent=55 // pred_region
          %s1422 = smul.u32 %s23, 2
          %s1423 = sadd.s32 %s1422, %s24
          %s1424 = smul.u32 16, %s1423
          %p1425 = scmp.lt.s32.totalorder %s1424, 63
          %s1426 = scalar_select %p1425, %s1424, 63
          %s1427 = smul.addr %s1426, 8
          %s1428 = scalar_lea.vmem %s3, %s1427
        $region60: #{tpu_custom_call.1} parent=55 // pred_fallthru
          _
      $region56: #{tpu_custom_call.1} parent=5 // pred_fallthru
        _
    $region6: #{tpu_custom_call.1} parent=1 // loop_footer
      %s16 = sadd.s32 1, %s12
    $region7: #{tpu_custom_call.1} parent=1 // loop_footer_branch
      %11 = sbr.rel target = $region3
    $region8: #{tpu_custom_call.1} parent=1 // loop_exit
      _
    %1429 = vsyncpa [#allocation5], 1
    %s1430 = scalar_lea.sflag [#allocation5], 1
    %1431 = vsyncpa %s1430, 1

</llo_original>
